<compile_context>
chip_gen: v7x
topology: tpu7x:2x2x1
jax: 0.10.0
libtpu: 0.0.40
codegen_flags: <defaults>
</compile_context>

<pallas_src>
import numpy as np
import jax
import jax.numpy as jnp
from jax.experimental import pallas as pl
from jax.experimental.pallas import tpu as pltpu

# ----------------------------- configuration ------------------------------
D_MODEL = 32          # d_model
NHEAD = 4             # nhead
DIM_FF = 64           # dim_feedforward
L = 8                 # tgt sequence length
S = 16                # memory sequence length
N = 2                 # batch
HEAD_DIM = D_MODEL // NHEAD
LN_EPS = 1e-5
NEG_INF = -1e30       # additive mask value (exp underflows to exactly 0)

LNR = L * N           # tgt rows after batch fold
SNR = S * N           # memory rows after batch fold
RTOT = LNR + SNR      # total folded rows
LANES = 128

# ---- f32 param slab row layout (one (P_ROWS, 128) array) ----
P_G = 0                       # (RTOT, E) per-row LN gamma (norm1 rows then norm2 rows)
P_B = P_G + RTOT              # (RTOT, E) per-row LN beta
P_MASK = P_B + RTOT           # (LNR, SNR) additive attention-mask bias
P_VEC = P_MASK + LNR          # 8 small vectors, one per row
(V_BQKV, V_BO, V_B1, V_B2, V_G3, V_BE3, V_G4, V_BE4) = range(8)
P_ROWS = ((P_VEC + 8 + 7) // 8) * 8            # = 120

# ---- bf16 weight slab row layout (one (W_ROWS, 128) array) ----
W_QKV = 0                     # (E, 3E)  x @ Wqkv  -> [q | k | v]
W_O = W_QKV + D_MODEL         # (E, E)   out-proj (pre-transposed)
W_1 = W_O + D_MODEL           # (E, F)   linear1 (pre-transposed)
W_2 = W_1 + D_MODEL           # (F, E)   linear2 (pre-transposed)
W_ROWS = ((W_2 + DIM_FF + 15) // 16) * 16      # = 160 (bf16 sublane-pack aligned)


# ------------------------------ mask helpers ------------------------------
def adaptive_mask_np(aa, bb, ada_para):
    """Float re-implementation of adaptive_mask: 1.0 where attention is DISALLOWED."""
    t = np.zeros((aa, bb), dtype=np.float32)
    adaptive_num = int(bb * ada_para)
    cc = int(bb / aa)
    for i in range(aa):
        start_col = i * cc
        end_col = start_col + cc + adaptive_num
        if end_col > bb - 1:
            tmp = end_col - (bb - 1)
            start_col = start_col - tmp
            if start_col < 0:
                start_col = 0
            end_col = bb
        t[i, start_col:end_col] = 1.0
    return 1.0 - t  # 1.0 = masked


def build_mask_bias(Lq, Sk, Nb, ada=0.2):
    """Additive bias for the batch-folded score matrix.

    Rows are (l, n) with n fastest; columns are (s, n') with n' fastest
    (matching the free reshape of seq-major tensors).  Allowed only when
    n == n' AND the adaptive window allows (l, s); otherwise NEG_INF.
    """
    allow = 1.0 - adaptive_mask_np(Lq, Sk, ada)                 # (L, S), 1 = allowed
    eye = np.eye(Nb, dtype=np.float32)
    allow_full = (allow[:, None, :, None] * eye[None, :, None, :]).reshape(
        Lq * Nb, Sk * Nb)
    return np.where(allow_full > 0.0, 0.0, NEG_INF).astype(np.float32)


# ------------------------------- the kernel -------------------------------
def frame_layer_kernel(x_ref, par_ref, w_ref, y_ref, attw_ref):
    E, F, H, D = D_MODEL, DIM_FF, NHEAD, HEAD_DIM

    def vrow(i, n):                           # packed small-vector row -> (1, n) f32
        r = P_VEC + i
        return par_ref[r:r + 1, 0:n]

    def layer_norm(x, g, b):
        mu = jnp.mean(x, axis=-1, keepdims=True)
        var = jnp.mean(jnp.square(x - mu), axis=-1, keepdims=True)
        return (x - mu) * jax.lax.rsqrt(var + LN_EPS) * g + b

    # ---- merged norm1 (tgt rows) / norm2 (memory rows): one LN over (RTOT, E)
    x = x_ref[...]                                                # (RTOT, E) f32
    g12 = par_ref[P_G:P_G + RTOT, 0:E]
    b12 = par_ref[P_B:P_B + RTOT, 0:E]
    xn = layer_norm(x, g12, b12)                                  # (RTOT, E) f32
    xb = xn.astype(jnp.bfloat16)

    # ---- fused QKV projection: one (RTOT,E)@(E,3E) bf16 MXU matmul
    w_qkv = w_ref[W_QKV:W_QKV + E, 0:3 * E]                       # (E, 3E) bf16
    qkv = jnp.dot(xb, w_qkv, preferred_element_type=jnp.float32) \
        + vrow(V_BQKV, 3 * E)                                     # (RTOT, 3E) f32

    q = qkv[0:LNR, 0:E]                       # tgt rows; 1/sqrt(D) folded into W/b
    k = qkv[LNR:RTOT, E:2 * E]                # memory rows
    v = qkv[LNR:RTOT, 2 * E:3 * E]            # memory rows

    mask = par_ref[P_MASK:P_MASK + LNR, 0:SNR]                    # (LNR, SNR) additive

    qb = q.astype(jnp.bfloat16)
    kt = k.T                                                       # (E, SNR) f32, one transpose
    vb = v.astype(jnp.bfloat16)

    # ---- per-head attention (D=8 contraction is inherent; small static loop)
    ctx_heads = []
    attw_acc = jnp.zeros((LNR, SNR), jnp.float32)
    for h in range(H):
        lo, hi = h * D, (h + 1) * D
        s = jnp.dot(qb[:, lo:hi], kt[lo:hi, :].astype(jnp.bfloat16),
                    preferred_element_type=jnp.float32) + mask     # (LNR, SNR)
        smax = jnp.max(s, axis=-1, keepdims=True)
        e = jnp.exp(s - smax)                  # masked entries underflow to exactly 0
        denom = jnp.sum(e, axis=-1, keepdims=True)
        inv = pl.reciprocal(denom, approx=True)
        inv = inv * (2.0 - denom * inv)        # one Newton step -> ~f32 accuracy
        p = e * inv                                                # (LNR, SNR) f32
        attw_acc = attw_acc + p
        ctx_heads.append(jnp.dot(p.astype(jnp.bfloat16), vb[:, lo:hi],
                                 preferred_element_type=jnp.float32))  # (LNR, D)

    attw_ref[...] = attw_acc * (1.0 / H)       # head-averaged, batch-folded

    # ---- merge heads (H*D = E = 32 lanes) + single out-projection matmul
    ctx = jnp.concatenate(ctx_heads, axis=-1)                      # (LNR, E)
    w_o = w_ref[W_O:W_O + E, 0:E]                                  # (E, E) bf16
    attn_out = jnp.dot(ctx.astype(jnp.bfloat16), w_o,
                       preferred_element_type=jnp.float32) + vrow(V_BO, E)

    # ---- residual + norm3 (dropout1 = identity at inference)
    t = xn[0:LNR, :]
    x3 = layer_norm(t + attn_out, vrow(V_G3, E), vrow(V_BE3, E))

    # ---- feed-forward: linear2(relu(linear1(x)))  (dropout = identity)
    w1 = w_ref[W_1:W_1 + E, 0:F]                                   # (E, F) bf16
    w2 = w_ref[W_2:W_2 + F, 0:E]                                   # (F, E) bf16
    h1 = jnp.maximum(
        jnp.dot(x3.astype(jnp.bfloat16), w1,
                preferred_element_type=jnp.float32) + vrow(V_B1, F), 0.0)
    ff = jnp.dot(h1.astype(jnp.bfloat16), w2,
                 preferred_element_type=jnp.float32) + vrow(V_B2, E)

    # ---- residual + norm4 (dropout2 = identity)
    y_ref[...] = layer_norm(x3 + ff, vrow(V_G4, E), vrow(V_BE4, E))


# ------------------------------- the wrapper -------------------------------
@jax.jit
def frame_layer(tgt, memory, packed):
    """tgt: (L, N, E), memory: (S, N, E).  Returns (tgt_out (L,N,E), attn_w (N,L,S))."""
    Lq, Nb, E = tgt.shape
    Sk = memory.shape[0]

    # Free reshapes (contiguous, row order (l,n)/(s,n)) + one tiny concatenate.
    x_flat = jnp.concatenate(
        [tgt.reshape(Lq * Nb, E), memory.reshape(Sk * Nb, E)], axis=0)

    vmem = pl.BlockSpec(memory_space=pltpu.MemorySpace.VMEM)
    y_flat, attw = pl.pallas_call(
        frame_layer_kernel,
        out_shape=(jax.ShapeDtypeStruct((Lq * Nb, E), jnp.float32),
                   jax.ShapeDtypeStruct((Lq * Nb, Sk * Nb), jnp.float32)),
        in_specs=[vmem, vmem, vmem],
        out_specs=(vmem, vmem),
    )(x_flat, packed["par"], packed["wts"])

    out = y_flat.reshape(Lq, Nb, E)                                # (L, N, E)
    # Explicit block-diagonal extraction of own-batch attention weights
    # (no reliance on exact-zero cross-batch softmax leakage).
    attw4 = attw.reshape(Lq, Nb, Sk, Nb)                           # (L, N, S, N')
    idx = jnp.arange(Nb)
    attn_w = attw4[:, idx, :, idx]                                 # (N, L, S)
    return out, attn_w


# ------------------------------ param setup -------------------------------
def init_params(key):
    E, F = D_MODEL, DIM_FF
    ks = jax.random.split(key, 12)
    s = 0.05
    p = {
        # multihead_attn in_proj split into q/k/v (each (E, E) PyTorch (out,in))
        "wq": jax.random.normal(ks[0], (E, E), jnp.float32) * s,
        "wk": jax.random.normal(ks[1], (E, E), jnp.float32) * s,
        "wv": jax.random.normal(ks[2], (E, E), jnp.float32) * s,
        "bq": jax.random.normal(ks[3], (1, E), jnp.float32) * s,
        "bk": jax.random.normal(ks[4], (1, E), jnp.float32) * s,
        "bv": jax.random.normal(ks[5], (1, E), jnp.float32) * s,
        "wo": jax.random.normal(ks[6], (E, E), jnp.float32) * s,
        "bo": jax.random.normal(ks[7], (1, E), jnp.float32) * s,
        # feed-forward
        "w1": jax.random.normal(ks[8], (F, E), jnp.float32) * s,
        "bff1": jax.random.normal(ks[9], (1, F), jnp.float32) * s,
        "w2": jax.random.normal(ks[10], (E, F), jnp.float32) * s,
        "bff2": jax.random.normal(ks[11], (1, E), jnp.float32) * s,
    }
    # LayerNorm params (PyTorch default init: weight=1, bias=0)
    for i in (1, 2, 3, 4):
        p[f"g{i}"] = jnp.ones((1, D_MODEL), jnp.float32)
        p[f"be{i}"] = jnp.zeros((1, D_MODEL), jnp.float32)
    # NOTE: self_attn / self_attn_vis from __init__ are unused in forward(); omitted.
    return p


def pack_params(p):
    """Host-side packing done once:
       - (120,128) f32 slab: per-row LN gamma/beta, mask bias, all small biases.
       - (160,128) bf16 slab: lane-dense, pre-transposed weights (q-scale folded in).
    """
    E, F, D = D_MODEL, DIM_FF, HEAD_DIM
    scale = 1.0 / float(np.sqrt(D))

    par = np.zeros((P_ROWS, LANES), np.float32)
    par[P_G:P_G + LNR, :E] = np.asarray(p["g1"], np.float32)
    par[P_G + LNR:P_G + RTOT, :E] = np.asarray(p["g2"], np.float32)
    par[P_B:P_B + LNR, :E] = np.asarray(p["be1"], np.float32)
    par[P_B + LNR:P_B + RTOT, :E] = np.asarray(p["be2"], np.float32)
    par[P_MASK:P_MASK + LNR, :SNR] = build_mask_bias(L, S, N, ada=0.2)
    bq = np.asarray(p["bq"], np.float32).reshape(-1) * scale        # fold q scale
    bk = np.asarray(p["bk"], np.float32).reshape(-1)
    bv = np.asarray(p["bv"], np.float32).reshape(-1)
    par[P_VEC + V_BQKV, :3 * E] = np.concatenate([bq, bk, bv])
    par[P_VEC + V_BO, :E] = np.asarray(p["bo"], np.float32).reshape(-1)
    par[P_VEC + V_B1, :F] = np.asarray(p["bff1"], np.float32).reshape(-1)
    par[P_VEC + V_B2, :E] = np.asarray(p["bff2"], np.float32).reshape(-1)
    par[P_VEC + V_G3, :E] = np.asarray(p["g3"], np.float32).reshape(-1)
    par[P_VEC + V_BE3, :E] = np.asarray(p["be3"], np.float32).reshape(-1)
    par[P_VEC + V_G4, :E] = np.asarray(p["g4"], np.float32).reshape(-1)
    par[P_VEC + V_BE4, :E] = np.asarray(p["be4"], np.float32).reshape(-1)

    wts = np.zeros((W_ROWS, LANES), np.float32)
    wts[W_QKV:W_QKV + E, 0:E] = np.asarray(p["wq"], np.float32).T * scale
    wts[W_QKV:W_QKV + E, E:2 * E] = np.asarray(p["wk"], np.float32).T
    wts[W_QKV:W_QKV + E, 2 * E:3 * E] = np.asarray(p["wv"], np.float32).T
    wts[W_O:W_O + E, 0:E] = np.asarray(p["wo"], np.float32).T
    wts[W_1:W_1 + E, 0:F] = np.asarray(p["w1"], np.float32).T
    wts[W_2:W_2 + F, 0:E] = np.asarray(p["w2"], np.float32).T

    return {"par": jnp.asarray(par),
            "wts": jnp.asarray(wts, dtype=jnp.bfloat16)}


# --------------------------- pure-JAX reference ----------------------------
def reference_forward(tgt, memory, p):
    E, H, D = D_MODEL, NHEAD, HEAD_DIM
    Lq, Nb, _ = tgt.shape
    Sk = memory.shape[0]
    hp = jax.lax.Precision.HIGHEST

    def ln(x, g, b):
        mu = jnp.mean(x, -1, keepdims=True)
        var = jnp.mean(jnp.square(x - mu), -1, keepdims=True)
        return (x - mu) * jax.lax.rsqrt(var + LN_EPS) * g + b

    t = ln(tgt, p["g1"], p["be1"])
    m = ln(memory, p["g2"], p["be2"])
    q = jnp.einsum('lne,fe->lnf', t, p["wq"], precision=hp) + p["bq"]
    k = jnp.einsum('sne,fe->snf', m, p["wk"], precision=hp) + p["bk"]
    v = jnp.einsum('sne,fe->snf', m, p["wv"], precision=hp) + p["bv"]
    qh = q.reshape(Lq, Nb, H, D)
    kh = k.reshape(Sk, Nb, H, D)
    vh = v.reshape(Sk, Nb, H, D)
    scores = jnp.einsum('lnhd,snhd->nhls', qh, kh, precision=hp) / np.sqrt(D)
    masked = jnp.asarray(adaptive_mask_np(Lq, Sk, 0.2))        # 1 = disallowed
    scores = jnp.where(masked[None, None] > 0, NEG_INF, scores)
    pr = jax.nn.softmax(scores, axis=-1)                       # (N, H, L, S)
    attn_w = jnp.mean(pr, axis=1)                              # (N, L, S)
    ctx = jnp.einsum('nhls,snhd->lnhd', pr, vh, precision=hp).reshape(Lq, Nb, E)
    attn_out = jnp.einsum('lne,fe->lnf', ctx, p["wo"], precision=hp) + p["bo"]
    x = ln(t + attn_out, p["g3"], p["be3"])
    h1 = jax.nn.relu(jnp.einsum('lne,fe->lnf', x, p["w1"], precision=hp) + p["bff1"])
    ff = jnp.einsum('lnf,ef->lne', h1, p["w2"], precision=hp) + p["bff2"]
    y = ln(x + ff, p["g4"], p["be4"])
    return y, attn_w


if __name__ == "__main__":
    key = jax.random.PRNGKey(0)
    k_t, k_m, k_p = jax.random.split(key, 3)

    tgt = jax.random.normal(k_t, (L, N, D_MODEL), jnp.float32)      # (L, N, E)
    memory = jax.random.normal(k_m, (S, N, D_MODEL), jnp.float32)   # (S, N, E)
    params = init_params(k_p)
    packed = pack_params(params)

    out, attn_w = frame_layer(tgt, memory, packed)
    out = jax.block_until_ready(out)
    attn_w = jax.block_until_ready(attn_w)

    assert out.shape == (L, N, D_MODEL)
    assert attn_w.shape == (N, L, S)
    assert bool(jnp.all(jnp.isfinite(out)))
    assert bool(jnp.all(jnp.isfinite(attn_w)))
    # attention weights along S must sum to 1 for every (batch, query) row
    assert bool(jnp.allclose(jnp.sum(attn_w, axis=-1), 1.0, atol=1e-4))

    # compare against a pure-JAX f32 reference of the same forward pass
    out_ref, attn_ref = reference_forward(tgt, memory, params)
    assert bool(jnp.allclose(out, out_ref, atol=2e-2, rtol=2e-2))
    assert bool(jnp.allclose(attn_w, attn_ref, atol=2e-2, rtol=2e-2))

    print("KERNEL_OK")
</pallas_src>

<mosaic_0001>
module attributes {stable_mosaic.version = 11 : i64} {
  func.func @frame_layer_kernel(%arg0: memref<48x32xf32, #tpu.memory_space<vmem>>, %arg1: memref<120x128xf32, #tpu.memory_space<vmem>>, %arg2: memref<160x128xbf16, #tpu.memory_space<vmem>>, %arg3: memref<16x32xf32, #tpu.memory_space<vmem>>, %arg4: memref<16x32xf32, #tpu.memory_space<vmem>>) attributes {dimension_semantics = [], scalar_prefetch = 0 : i64, scratch_operands = 0 : i64, tpu.core_type = #tpu.core_type<tc>} {
    %c0 = arith.constant 0 : index
    %c0_0 = arith.constant 0 : index
    %0 = vector.load %arg0[%c0, %c0_0] : memref<48x32xf32, #tpu.memory_space<vmem>>, vector<48x32xf32>
    %c0_1 = arith.constant 0 : index
    %c0_2 = arith.constant 0 : index
    %1 = vector.load %arg1[%c0_1, %c0_2] : memref<120x128xf32, #tpu.memory_space<vmem>>, vector<48x32xf32>
    %c48 = arith.constant 48 : index
    %c0_3 = arith.constant 0 : index
    %2 = vector.load %arg1[%c48, %c0_3] : memref<120x128xf32, #tpu.memory_space<vmem>>, vector<48x32xf32>
    %cst = arith.constant dense<0.000000e+00> : vector<48xf32>
    %3 = vector.multi_reduction <add>, %0, %cst [1] : vector<48x32xf32> to vector<48xf32>
    %4 = vector.shape_cast %3 : vector<48xf32> to vector<48x1xf32>
    %cst_4 = arith.constant 3.200000e+01 : f32
    %5 = vector.broadcast %cst_4 : f32 to vector<48x1xf32>
    %6 = arith.divf %4, %5 : vector<48x1xf32>
    %7 = vector.broadcast %6 : vector<48x1xf32> to vector<48x32xf32>
    %8 = arith.subf %0, %7 : vector<48x32xf32>
    %9 = arith.mulf %8, %8 : vector<48x32xf32>
    %cst_5 = arith.constant dense<0.000000e+00> : vector<48xf32>
    %10 = vector.multi_reduction <add>, %9, %cst_5 [1] : vector<48x32xf32> to vector<48xf32>
    %11 = vector.shape_cast %10 : vector<48xf32> to vector<48x1xf32>
    %cst_6 = arith.constant 3.200000e+01 : f32
    %12 = vector.broadcast %cst_6 : f32 to vector<48x1xf32>
    %13 = arith.divf %11, %12 : vector<48x1xf32>
    %14 = vector.broadcast %6 : vector<48x1xf32> to vector<48x32xf32>
    %15 = arith.subf %0, %14 : vector<48x32xf32>
    %cst_7 = arith.constant 9.99999974E-6 : f32
    %16 = vector.broadcast %cst_7 : f32 to vector<48x1xf32>
    %17 = arith.addf %13, %16 : vector<48x1xf32>
    %18 = math.rsqrt %17 : vector<48x1xf32>
    %19 = vector.broadcast %18 : vector<48x1xf32> to vector<48x32xf32>
    %20 = arith.mulf %15, %19 : vector<48x32xf32>
    %21 = arith.mulf %20, %1 : vector<48x32xf32>
    %22 = arith.addf %21, %2 : vector<48x32xf32>
    %23 = arith.truncf %22 : vector<48x32xf32> to vector<48x32xbf16>
    %c0_8 = arith.constant 0 : index
    %c0_9 = arith.constant 0 : index
    %24 = vector.load %arg2[%c0_8, %c0_9] : memref<160x128xbf16, #tpu.memory_space<vmem>>, vector<32x96xbf16>
    %cst_10 = arith.constant dense<0.000000e+00> : vector<48x96xf32>
    %25 = tpu.matmul %23, %24, %cst_10 {dimension_numbers = #tpu.dot_dimension_numbers<[1], [0], [0], [1], [0, 0, 1, 1], [], []>} : vector<48x32xbf16>, vector<32x96xbf16>, vector<48x96xf32> -> vector<48x96xf32>
    %c112 = arith.constant 112 : index
    %c0_11 = arith.constant 0 : index
    %26 = vector.load %arg1[%c112, %c0_11] : memref<120x128xf32, #tpu.memory_space<vmem>>, vector<1x96xf32>
    %27 = vector.broadcast %26 : vector<1x96xf32> to vector<48x96xf32>
    %28 = arith.addf %25, %27 : vector<48x96xf32>
    %29 = vector.extract_strided_slice %28 {offsets = [0, 0], sizes = [16, 32], strides = [1, 1]} : vector<48x96xf32> to vector<16x32xf32>
    %30 = vector.extract_strided_slice %28 {offsets = [16, 32], sizes = [32, 32], strides = [1, 1]} : vector<48x96xf32> to vector<32x32xf32>
    %31 = vector.extract_strided_slice %28 {offsets = [16, 64], sizes = [32, 32], strides = [1, 1]} : vector<48x96xf32> to vector<32x32xf32>
    %c96 = arith.constant 96 : index
    %c0_12 = arith.constant 0 : index
    %32 = vector.load %arg1[%c96, %c0_12] : memref<120x128xf32, #tpu.memory_space<vmem>>, vector<16x32xf32>
    %33 = arith.truncf %29 : vector<16x32xf32> to vector<16x32xbf16>
    %34 = tpu.transpose %30, [1, 0] : vector<32x32xf32> -> vector<32x32xf32>
    %35 = arith.truncf %31 : vector<32x32xf32> to vector<32x32xbf16>
    %cst_13 = arith.constant 0.000000e+00 : f32
    %36 = vector.broadcast %cst_13 : f32 to vector<16x32xf32>
    %37 = vector.extract_strided_slice %33 {offsets = [0, 0], sizes = [16, 8], strides = [1, 1]} : vector<16x32xbf16> to vector<16x8xbf16>
    %38 = vector.extract_strided_slice %34 {offsets = [0, 0], sizes = [8, 32], strides = [1, 1]} : vector<32x32xf32> to vector<8x32xf32>
    %39 = arith.truncf %38 : vector<8x32xf32> to vector<8x32xbf16>
    %cst_14 = arith.constant dense<0.000000e+00> : vector<16x32xf32>
    %40 = tpu.matmul %37, %39, %cst_14 {dimension_numbers = #tpu.dot_dimension_numbers<[1], [0], [0], [1], [0, 0, 1, 1], [], []>} : vector<16x8xbf16>, vector<8x32xbf16>, vector<16x32xf32> -> vector<16x32xf32>
    %41 = arith.addf %40, %32 : vector<16x32xf32>
    %cst_15 = arith.constant dense<0xFF800000> : vector<16xf32>
    %42 = vector.multi_reduction <maximumf>, %41, %cst_15 [1] : vector<16x32xf32> to vector<16xf32>
    %43 = vector.shape_cast %42 : vector<16xf32> to vector<16x1xf32>
    %44 = vector.broadcast %43 : vector<16x1xf32> to vector<16x32xf32>
    %45 = arith.subf %41, %44 : vector<16x32xf32>
    %46 = math.exp %45 : vector<16x32xf32>
    %cst_16 = arith.constant dense<0.000000e+00> : vector<16xf32>
    %47 = vector.multi_reduction <add>, %46, %cst_16 [1] : vector<16x32xf32> to vector<16xf32>
    %48 = vector.shape_cast %47 : vector<16xf32> to vector<16x1xf32>
    %49 = tpu.reciprocal %48 {approx = true} : vector<16x1xf32> -> vector<16x1xf32>
    %50 = arith.mulf %48, %49 : vector<16x1xf32>
    %cst_17 = arith.constant 2.000000e+00 : f32
    %51 = vector.broadcast %cst_17 : f32 to vector<16x1xf32>
    %52 = arith.subf %51, %50 : vector<16x1xf32>
    %53 = arith.mulf %49, %52 : vector<16x1xf32>
    %54 = vector.broadcast %53 : vector<16x1xf32> to vector<16x32xf32>
    %55 = arith.mulf %46, %54 : vector<16x32xf32>
    %56 = arith.addf %36, %55 : vector<16x32xf32>
    %57 = arith.truncf %55 : vector<16x32xf32> to vector<16x32xbf16>
    %58 = vector.extract_strided_slice %35 {offsets = [0, 0], sizes = [32, 8], strides = [1, 1]} : vector<32x32xbf16> to vector<32x8xbf16>
    %cst_18 = arith.constant dense<0.000000e+00> : vector<16x8xf32>
    %59 = tpu.matmul %57, %58, %cst_18 {dimension_numbers = #tpu.dot_dimension_numbers<[1], [0], [0], [1], [0, 0, 1, 1], [], []>} : vector<16x32xbf16>, vector<32x8xbf16>, vector<16x8xf32> -> vector<16x8xf32>
    %60 = vector.extract_strided_slice %33 {offsets = [0, 8], sizes = [16, 8], strides = [1, 1]} : vector<16x32xbf16> to vector<16x8xbf16>
    %61 = vector.extract_strided_slice %34 {offsets = [8, 0], sizes = [8, 32], strides = [1, 1]} : vector<32x32xf32> to vector<8x32xf32>
    %62 = arith.truncf %61 : vector<8x32xf32> to vector<8x32xbf16>
    %cst_19 = arith.constant dense<0.000000e+00> : vector<16x32xf32>
    %63 = tpu.matmul %60, %62, %cst_19 {dimension_numbers = #tpu.dot_dimension_numbers<[1], [0], [0], [1], [0, 0, 1, 1], [], []>} : vector<16x8xbf16>, vector<8x32xbf16>, vector<16x32xf32> -> vector<16x32xf32>
    %64 = arith.addf %63, %32 : vector<16x32xf32>
    %cst_20 = arith.constant dense<0xFF800000> : vector<16xf32>
    %65 = vector.multi_reduction <maximumf>, %64, %cst_20 [1] : vector<16x32xf32> to vector<16xf32>
    %66 = vector.shape_cast %65 : vector<16xf32> to vector<16x1xf32>
    %67 = vector.broadcast %66 : vector<16x1xf32> to vector<16x32xf32>
    %68 = arith.subf %64, %67 : vector<16x32xf32>
    %69 = math.exp %68 : vector<16x32xf32>
    %cst_21 = arith.constant dense<0.000000e+00> : vector<16xf32>
    %70 = vector.multi_reduction <add>, %69, %cst_21 [1] : vector<16x32xf32> to vector<16xf32>
    %71 = vector.shape_cast %70 : vector<16xf32> to vector<16x1xf32>
    %72 = tpu.reciprocal %71 {approx = true} : vector<16x1xf32> -> vector<16x1xf32>
    %73 = arith.mulf %71, %72 : vector<16x1xf32>
    %cst_22 = arith.constant 2.000000e+00 : f32
    %74 = vector.broadcast %cst_22 : f32 to vector<16x1xf32>
    %75 = arith.subf %74, %73 : vector<16x1xf32>
    %76 = arith.mulf %72, %75 : vector<16x1xf32>
    %77 = vector.broadcast %76 : vector<16x1xf32> to vector<16x32xf32>
    %78 = arith.mulf %69, %77 : vector<16x32xf32>
    %79 = arith.addf %56, %78 : vector<16x32xf32>
    %80 = arith.truncf %78 : vector<16x32xf32> to vector<16x32xbf16>
    %81 = vector.extract_strided_slice %35 {offsets = [0, 8], sizes = [32, 8], strides = [1, 1]} : vector<32x32xbf16> to vector<32x8xbf16>
    %cst_23 = arith.constant dense<0.000000e+00> : vector<16x8xf32>
    %82 = tpu.matmul %80, %81, %cst_23 {dimension_numbers = #tpu.dot_dimension_numbers<[1], [0], [0], [1], [0, 0, 1, 1], [], []>} : vector<16x32xbf16>, vector<32x8xbf16>, vector<16x8xf32> -> vector<16x8xf32>
    %83 = vector.extract_strided_slice %33 {offsets = [0, 16], sizes = [16, 8], strides = [1, 1]} : vector<16x32xbf16> to vector<16x8xbf16>
    %84 = vector.extract_strided_slice %34 {offsets = [16, 0], sizes = [8, 32], strides = [1, 1]} : vector<32x32xf32> to vector<8x32xf32>
    %85 = arith.truncf %84 : vector<8x32xf32> to vector<8x32xbf16>
    %cst_24 = arith.constant dense<0.000000e+00> : vector<16x32xf32>
    %86 = tpu.matmul %83, %85, %cst_24 {dimension_numbers = #tpu.dot_dimension_numbers<[1], [0], [0], [1], [0, 0, 1, 1], [], []>} : vector<16x8xbf16>, vector<8x32xbf16>, vector<16x32xf32> -> vector<16x32xf32>
    %87 = arith.addf %86, %32 : vector<16x32xf32>
    %cst_25 = arith.constant dense<0xFF800000> : vector<16xf32>
    %88 = vector.multi_reduction <maximumf>, %87, %cst_25 [1] : vector<16x32xf32> to vector<16xf32>
    %89 = vector.shape_cast %88 : vector<16xf32> to vector<16x1xf32>
    %90 = vector.broadcast %89 : vector<16x1xf32> to vector<16x32xf32>
    %91 = arith.subf %87, %90 : vector<16x32xf32>
    %92 = math.exp %91 : vector<16x32xf32>
    %cst_26 = arith.constant dense<0.000000e+00> : vector<16xf32>
    %93 = vector.multi_reduction <add>, %92, %cst_26 [1] : vector<16x32xf32> to vector<16xf32>
    %94 = vector.shape_cast %93 : vector<16xf32> to vector<16x1xf32>
    %95 = tpu.reciprocal %94 {approx = true} : vector<16x1xf32> -> vector<16x1xf32>
    %96 = arith.mulf %94, %95 : vector<16x1xf32>
    %cst_27 = arith.constant 2.000000e+00 : f32
    %97 = vector.broadcast %cst_27 : f32 to vector<16x1xf32>
    %98 = arith.subf %97, %96 : vector<16x1xf32>
    %99 = arith.mulf %95, %98 : vector<16x1xf32>
    %100 = vector.broadcast %99 : vector<16x1xf32> to vector<16x32xf32>
    %101 = arith.mulf %92, %100 : vector<16x32xf32>
    %102 = arith.addf %79, %101 : vector<16x32xf32>
    %103 = arith.truncf %101 : vector<16x32xf32> to vector<16x32xbf16>
    %104 = vector.extract_strided_slice %35 {offsets = [0, 16], sizes = [32, 8], strides = [1, 1]} : vector<32x32xbf16> to vector<32x8xbf16>
    %cst_28 = arith.constant dense<0.000000e+00> : vector<16x8xf32>
    %105 = tpu.matmul %103, %104, %cst_28 {dimension_numbers = #tpu.dot_dimension_numbers<[1], [0], [0], [1], [0, 0, 1, 1], [], []>} : vector<16x32xbf16>, vector<32x8xbf16>, vector<16x8xf32> -> vector<16x8xf32>
    %106 = vector.extract_strided_slice %33 {offsets = [0, 24], sizes = [16, 8], strides = [1, 1]} : vector<16x32xbf16> to vector<16x8xbf16>
    %107 = vector.extract_strided_slice %34 {offsets = [24, 0], sizes = [8, 32], strides = [1, 1]} : vector<32x32xf32> to vector<8x32xf32>
    %108 = arith.truncf %107 : vector<8x32xf32> to vector<8x32xbf16>
    %cst_29 = arith.constant dense<0.000000e+00> : vector<16x32xf32>
    %109 = tpu.matmul %106, %108, %cst_29 {dimension_numbers = #tpu.dot_dimension_numbers<[1], [0], [0], [1], [0, 0, 1, 1], [], []>} : vector<16x8xbf16>, vector<8x32xbf16>, vector<16x32xf32> -> vector<16x32xf32>
    %110 = arith.addf %109, %32 : vector<16x32xf32>
    %cst_30 = arith.constant dense<0xFF800000> : vector<16xf32>
    %111 = vector.multi_reduction <maximumf>, %110, %cst_30 [1] : vector<16x32xf32> to vector<16xf32>
    %112 = vector.shape_cast %111 : vector<16xf32> to vector<16x1xf32>
    %113 = vector.broadcast %112 : vector<16x1xf32> to vector<16x32xf32>
    %114 = arith.subf %110, %113 : vector<16x32xf32>
    %115 = math.exp %114 : vector<16x32xf32>
    %cst_31 = arith.constant dense<0.000000e+00> : vector<16xf32>
    %116 = vector.multi_reduction <add>, %115, %cst_31 [1] : vector<16x32xf32> to vector<16xf32>
    %117 = vector.shape_cast %116 : vector<16xf32> to vector<16x1xf32>
    %118 = tpu.reciprocal %117 {approx = true} : vector<16x1xf32> -> vector<16x1xf32>
    %119 = arith.mulf %117, %118 : vector<16x1xf32>
    %cst_32 = arith.constant 2.000000e+00 : f32
    %120 = vector.broadcast %cst_32 : f32 to vector<16x1xf32>
    %121 = arith.subf %120, %119 : vector<16x1xf32>
    %122 = arith.mulf %118, %121 : vector<16x1xf32>
    %123 = vector.broadcast %122 : vector<16x1xf32> to vector<16x32xf32>
    %124 = arith.mulf %115, %123 : vector<16x32xf32>
    %125 = arith.addf %102, %124 : vector<16x32xf32>
    %126 = arith.truncf %124 : vector<16x32xf32> to vector<16x32xbf16>
    %127 = vector.extract_strided_slice %35 {offsets = [0, 24], sizes = [32, 8], strides = [1, 1]} : vector<32x32xbf16> to vector<32x8xbf16>
    %cst_33 = arith.constant dense<0.000000e+00> : vector<16x8xf32>
    %128 = tpu.matmul %126, %127, %cst_33 {dimension_numbers = #tpu.dot_dimension_numbers<[1], [0], [0], [1], [0, 0, 1, 1], [], []>} : vector<16x32xbf16>, vector<32x8xbf16>, vector<16x8xf32> -> vector<16x8xf32>
    %cst_34 = arith.constant 2.500000e-01 : f32
    %129 = vector.broadcast %cst_34 : f32 to vector<16x32xf32>
    %130 = arith.mulf %125, %129 : vector<16x32xf32>
    %c0_35 = arith.constant 0 : index
    %c0_36 = arith.constant 0 : index
    %131 = vector.load %arg4[%c0_35, %c0_36] : memref<16x32xf32, #tpu.memory_space<vmem>>, vector<16x32xf32>
    tpu.vector_store %arg4[%c0_35, %c0_36], %130 {strides = array<i32>} : memref<16x32xf32, #tpu.memory_space<vmem>>, vector<16x32xf32>,
    %132 = tpu.concatenate %59, %82, %105, %128 in 1 : vector<16x8xf32>, vector<16x8xf32>, vector<16x8xf32>, vector<16x8xf32> -> vector<16x32xf32>
    %c32 = arith.constant 32 : index
    %c0_37 = arith.constant 0 : index
    %133 = vector.load %arg2[%c32, %c0_37] : memref<160x128xbf16, #tpu.memory_space<vmem>>, vector<32x32xbf16>
    %134 = arith.truncf %132 : vector<16x32xf32> to vector<16x32xbf16>
    %cst_38 = arith.constant dense<0.000000e+00> : vector<16x32xf32>
    %135 = tpu.matmul %134, %133, %cst_38 {dimension_numbers = #tpu.dot_dimension_numbers<[1], [0], [0], [1], [0, 0, 1, 1], [], []>} : vector<16x32xbf16>, vector<32x32xbf16>, vector<16x32xf32> -> vector<16x32xf32>
    %c113 = arith.constant 113 : index
    %c0_39 = arith.constant 0 : index
    %136 = vector.load %arg1[%c113, %c0_39] : memref<120x128xf32, #tpu.memory_space<vmem>>, vector<1x32xf32>
    %137 = vector.broadcast %136 : vector<1x32xf32> to vector<16x32xf32>
    %138 = arith.addf %135, %137 : vector<16x32xf32>
    %139 = vector.extract_strided_slice %22 {offsets = [0, 0], sizes = [16, 32], strides = [1, 1]} : vector<48x32xf32> to vector<16x32xf32>
    %140 = arith.addf %139, %138 : vector<16x32xf32>
    %c116 = arith.constant 116 : index
    %c0_40 = arith.constant 0 : index
    %141 = vector.load %arg1[%c116, %c0_40] : memref<120x128xf32, #tpu.memory_space<vmem>>, vector<1x32xf32>
    %c117 = arith.constant 117 : index
    %c0_41 = arith.constant 0 : index
    %142 = vector.load %arg1[%c117, %c0_41] : memref<120x128xf32, #tpu.memory_space<vmem>>, vector<1x32xf32>
    %cst_42 = arith.constant dense<0.000000e+00> : vector<16xf32>
    %143 = vector.multi_reduction <add>, %140, %cst_42 [1] : vector<16x32xf32> to vector<16xf32>
    %144 = vector.shape_cast %143 : vector<16xf32> to vector<16x1xf32>
    %cst_43 = arith.constant 3.200000e+01 : f32
    %145 = vector.broadcast %cst_43 : f32 to vector<16x1xf32>
    %146 = arith.divf %144, %145 : vector<16x1xf32>
    %147 = vector.broadcast %146 : vector<16x1xf32> to vector<16x32xf32>
    %148 = arith.subf %140, %147 : vector<16x32xf32>
    %149 = arith.mulf %148, %148 : vector<16x32xf32>
    %cst_44 = arith.constant dense<0.000000e+00> : vector<16xf32>
    %150 = vector.multi_reduction <add>, %149, %cst_44 [1] : vector<16x32xf32> to vector<16xf32>
    %151 = vector.shape_cast %150 : vector<16xf32> to vector<16x1xf32>
    %cst_45 = arith.constant 3.200000e+01 : f32
    %152 = vector.broadcast %cst_45 : f32 to vector<16x1xf32>
    %153 = arith.divf %151, %152 : vector<16x1xf32>
    %154 = vector.broadcast %146 : vector<16x1xf32> to vector<16x32xf32>
    %155 = arith.subf %140, %154 : vector<16x32xf32>
    %cst_46 = arith.constant 9.99999974E-6 : f32
    %156 = vector.broadcast %cst_46 : f32 to vector<16x1xf32>
    %157 = arith.addf %153, %156 : vector<16x1xf32>
    %158 = math.rsqrt %157 : vector<16x1xf32>
    %159 = vector.broadcast %158 : vector<16x1xf32> to vector<16x32xf32>
    %160 = arith.mulf %155, %159 : vector<16x32xf32>
    %161 = vector.broadcast %141 : vector<1x32xf32> to vector<16x32xf32>
    %162 = arith.mulf %160, %161 : vector<16x32xf32>
    %163 = vector.broadcast %142 : vector<1x32xf32> to vector<16x32xf32>
    %164 = arith.addf %162, %163 : vector<16x32xf32>
    %c64 = arith.constant 64 : index
    %c0_47 = arith.constant 0 : index
    %165 = vector.load %arg2[%c64, %c0_47] : memref<160x128xbf16, #tpu.memory_space<vmem>>, vector<32x64xbf16>
    %c96_48 = arith.constant 96 : index
    %c0_49 = arith.constant 0 : index
    %166 = vector.load %arg2[%c96_48, %c0_49] : memref<160x128xbf16, #tpu.memory_space<vmem>>, vector<64x32xbf16>
    %167 = arith.truncf %164 : vector<16x32xf32> to vector<16x32xbf16>
    %cst_50 = arith.constant dense<0.000000e+00> : vector<16x64xf32>
    %168 = tpu.matmul %167, %165, %cst_50 {dimension_numbers = #tpu.dot_dimension_numbers<[1], [0], [0], [1], [0, 0, 1, 1], [], []>} : vector<16x32xbf16>, vector<32x64xbf16>, vector<16x64xf32> -> vector<16x64xf32>
    %c114 = arith.constant 114 : index
    %c0_51 = arith.constant 0 : index
    %169 = vector.load %arg1[%c114, %c0_51] : memref<120x128xf32, #tpu.memory_space<vmem>>, vector<1x64xf32>
    %170 = vector.broadcast %169 : vector<1x64xf32> to vector<16x64xf32>
    %171 = arith.addf %168, %170 : vector<16x64xf32>
    %cst_52 = arith.constant 0.000000e+00 : f32
    %172 = vector.broadcast %cst_52 : f32 to vector<16x64xf32>
    %173 = arith.maximumf %171, %172 : vector<16x64xf32>
    %174 = arith.truncf %173 : vector<16x64xf32> to vector<16x64xbf16>
    %cst_53 = arith.constant dense<0.000000e+00> : vector<16x32xf32>
    %175 = tpu.matmul %174, %166, %cst_53 {dimension_numbers = #tpu.dot_dimension_numbers<[1], [0], [0], [1], [0, 0, 1, 1], [], []>} : vector<16x64xbf16>, vector<64x32xbf16>, vector<16x32xf32> -> vector<16x32xf32>
    %c115 = arith.constant 115 : index
    %c0_54 = arith.constant 0 : index
    %176 = vector.load %arg1[%c115, %c0_54] : memref<120x128xf32, #tpu.memory_space<vmem>>, vector<1x32xf32>
    %177 = vector.broadcast %176 : vector<1x32xf32> to vector<16x32xf32>
    %178 = arith.addf %175, %177 : vector<16x32xf32>
    %179 = arith.addf %164, %178 : vector<16x32xf32>
    %c118 = arith.constant 118 : index
    %c0_55 = arith.constant 0 : index
    %180 = vector.load %arg1[%c118, %c0_55] : memref<120x128xf32, #tpu.memory_space<vmem>>, vector<1x32xf32>
    %c119 = arith.constant 119 : index
    %c0_56 = arith.constant 0 : index
    %181 = vector.load %arg1[%c119, %c0_56] : memref<120x128xf32, #tpu.memory_space<vmem>>, vector<1x32xf32>
    %cst_57 = arith.constant dense<0.000000e+00> : vector<16xf32>
    %182 = vector.multi_reduction <add>, %179, %cst_57 [1] : vector<16x32xf32> to vector<16xf32>
    %183 = vector.shape_cast %182 : vector<16xf32> to vector<16x1xf32>
    %cst_58 = arith.constant 3.200000e+01 : f32
    %184 = vector.broadcast %cst_58 : f32 to vector<16x1xf32>
    %185 = arith.divf %183, %184 : vector<16x1xf32>
    %186 = vector.broadcast %185 : vector<16x1xf32> to vector<16x32xf32>
    %187 = arith.subf %179, %186 : vector<16x32xf32>
    %188 = arith.mulf %187, %187 : vector<16x32xf32>
    %cst_59 = arith.constant dense<0.000000e+00> : vector<16xf32>
    %189 = vector.multi_reduction <add>, %188, %cst_59 [1] : vector<16x32xf32> to vector<16xf32>
    %190 = vector.shape_cast %189 : vector<16xf32> to vector<16x1xf32>
    %cst_60 = arith.constant 3.200000e+01 : f32
    %191 = vector.broadcast %cst_60 : f32 to vector<16x1xf32>
    %192 = arith.divf %190, %191 : vector<16x1xf32>
    %193 = vector.broadcast %185 : vector<16x1xf32> to vector<16x32xf32>
    %194 = arith.subf %179, %193 : vector<16x32xf32>
    %cst_61 = arith.constant 9.99999974E-6 : f32
    %195 = vector.broadcast %cst_61 : f32 to vector<16x1xf32>
    %196 = arith.addf %192, %195 : vector<16x1xf32>
    %197 = math.rsqrt %196 : vector<16x1xf32>
    %198 = vector.broadcast %197 : vector<16x1xf32> to vector<16x32xf32>
    %199 = arith.mulf %194, %198 : vector<16x32xf32>
    %200 = vector.broadcast %180 : vector<1x32xf32> to vector<16x32xf32>
    %201 = arith.mulf %199, %200 : vector<16x32xf32>
    %202 = vector.broadcast %181 : vector<1x32xf32> to vector<16x32xf32>
    %203 = arith.addf %201, %202 : vector<16x32xf32>
    %c0_62 = arith.constant 0 : index
    %c0_63 = arith.constant 0 : index
    %204 = vector.load %arg3[%c0_62, %c0_63] : memref<16x32xf32, #tpu.memory_space<vmem>>, vector<16x32xf32>
    tpu.vector_store %arg3[%c0_62, %c0_63], %203 {strides = array<i32>} : memref<16x32xf32, #tpu.memory_space<vmem>>, vector<16x32xf32>,
    return
  }
}

</mosaic_0001>

<llo_original>
// kernel: frame_layer.1
$region0: #{frame_layer.1}
  #allocation0 [shape = 'u32[]', space=smem, size = 0x4, offset = 0x4, fixed_abs, tag = 'smem constant byte address 0x4 - core index']
  #allocation1 [shape = 'u32[144,128]{1,0:T(1,128)}', space=vmem, size = 0x12000, scoped, tag = 'internal scratch']
  %s0 = inlined_call_operand.vmem [shape: f32[48,32], index: 0, kind: input, shape index: {}]
  %s1 = inlined_call_operand.hbm [shape: f32[120,128], index: 1, kind: input, shape index: {}]
  %s2 = inlined_call_operand.vmem [shape: bf16[160,128], index: 2, kind: input, shape index: {}]
  %s3 = inlined_call_operand.hbm [shape: f32[16,32], index: 3, kind: output, shape index: {0}]
  %s4 = inlined_call_operand.vmem [shape: f32[16,32], index: 4, kind: output, shape index: {1}]
  %5 = xla_tuple %s3, %s4
  %s6 = sld [smem:[#allocation0]]
  $region34: #{frame_layer.1} parent=0
    _
  %s8 = ssub.s32 1, %s6
  %s9 = scalar_select 0, %s8, %s6
  $region1: #{frame_layer.1} parent=0
    #allocation2 [shape = 'u8[61440]{0}', space=vmem, size = 0xf000, scoped, tag = 'input window, operand 1, single buffered']
    #allocation3 [shape = 's32[1]{0}', space=sflag, size = 0x4, scoped, tag = 'scoped memory for frame_layer.1']
    #allocation4 [shape = 's32[1]{0}', space=sflag, size = 0x4, scoped, tag = 'scoped memory for frame_layer.1']
    #allocation5 [shape = 'u8[8192]{0}', space=vmem, size = 0x2000, scoped, tag = 'output window, operand 0, single buffered']
    %10 = vsyncpa [#allocation3], 0
    %11 = vsyncpa [#allocation4], 0
    // Predicated region
    $region2: #{frame_layer.1} parent=1 // pred_check
      _
    $region3: #{frame_layer.1} parent=1 // pred_check_branch
      %13 = sbr.rel (0) target = $region5
    $region4: #{frame_layer.1} parent=1 // pred_region
      _
    $region5: #{frame_layer.1} parent=1 // pred_fallthru
      _
    // Predicated region
    $region6: #{frame_layer.1} parent=1 // pred_check
      _
    $region7: #{frame_layer.1} parent=1 // pred_check_branch
      %15 = sbr.rel (0) target = $region9
    $region8: #{frame_layer.1} parent=1 // pred_region
      %s17 = ssub.s32 1920, 1920
      %18 = vsyncadd [#allocation3], %s17
      %s19 = sshll.u32 [#allocation2], 4
      %s20 = int_to_ptr.vmem [resolvable:$true] %s19
      %25 = dma.hbm_to_vmem [thread:$0]  %s1, 1920, %s20, [#allocation3], 128, 128, 8
    $region9: #{frame_layer.1} parent=1 // pred_fallthru
      _
    // Predicated region
    $region10: #{frame_layer.1} parent=1 // pred_check
      _
    $region11: #{frame_layer.1} parent=1 // pred_check_branch
      %27 = sbr.rel (0) target = $region13
    $region12: #{frame_layer.1} parent=1 // pred_region
      _
    $region13: #{frame_layer.1} parent=1 // pred_fallthru
      _
    // Predicated region
    $region14: #{frame_layer.1} parent=1 // pred_check
      _
    $region15: #{frame_layer.1} parent=1 // pred_check_branch
      %29 = sbr.rel (0) target = $region17
    $region16: #{frame_layer.1} parent=1 // pred_region
      %30 = dma.done [#allocation3], 1920
    $region17: #{frame_layer.1} parent=1 // pred_fallthru
      _
    %v32 = vld [vmem:[%s0] sm:$0xff]
    %v33 = vld [vmem:[%s0 + $0x8] sm:$0xff]
    %v34 = vld [vmem:[%s0 + $0x10] sm:$0xff]
    %v35 = vld [vmem:[%s0 + $0x18] sm:$0xff]
    %v36 = vld [vmem:[%s0 + $0x20] sm:$0xff]
    %v37 = vld [vmem:[%s0 + $0x28] sm:$0xff]
    %v38 = vld [vmem:[#allocation2] sm:$0xff]
    %v39 = vld [vmem:[#allocation2 + $0x8] sm:$0xff]
    %v40 = vld [vmem:[#allocation2 + $0x10] sm:$0xff]
    %v41 = vld [vmem:[#allocation2 + $0x18] sm:$0xff]
    %v42 = vld [vmem:[#allocation2 + $0x20] sm:$0xff]
    %v43 = vld [vmem:[#allocation2 + $0x28] sm:$0xff]
    %v44 = vld [vmem:[#allocation2 + $0x30] sm:$0xff]
    %v45 = vld [vmem:[#allocation2 + $0x38] sm:$0xff]
    %v46 = vld [vmem:[#allocation2 + $0x40] sm:$0xff]
    %v47 = vld [vmem:[#allocation2 + $0x48] sm:$0xff]
    %v48 = vld [vmem:[#allocation2 + $0x50] sm:$0xff]
    %v49 = vld [vmem:[#allocation2 + $0x58] sm:$0xff]
    %vm50 = vcmask 261120
    %v51 = vsel %vm50, %v32, 0.0
    %52 = vadd.xlane.f32.xlu0 %v51
    %v53 = vpop.xlane.xlu0 %52
    %v54 = vsel %vm50, %v33, 0.0
    %55 = vadd.xlane.f32.xlu0 %v54
    %v56 = vpop.xlane.xlu0 %55
    %v57 = vsel %vm50, %v34, 0.0
    %58 = vadd.xlane.f32.xlu0 %v57
    %v59 = vpop.xlane.xlu0 %58
    %v60 = vsel %vm50, %v35, 0.0
    %61 = vadd.xlane.f32.xlu0 %v60
    %v62 = vpop.xlane.xlu0 %61
    %v63 = vsel %vm50, %v36, 0.0
    %64 = vadd.xlane.f32.xlu0 %v63
    %v65 = vpop.xlane.xlu0 %64
    %v66 = vsel %vm50, %v37, 0.0
    %67 = vadd.xlane.f32.xlu0 %v66
    %v68 = vpop.xlane.xlu0 %67
    %v69 = vrcp.pop 32.0
    %v70 = vmul.f32 %v53, %v69
    %v71 = vmul.f32 %v56, %v69
    %v72 = vmul.f32 %v59, %v69
    %v73 = vmul.f32 %v62, %v69
    %v74 = vmul.f32 %v65, %v69
    %v75 = vmul.f32 %v68, %v69
    %v76 = vsub.f32 %v32, %v70
    %v77 = vsub.f32 %v33, %v71
    %v78 = vsub.f32 %v34, %v72
    %v79 = vsub.f32 %v35, %v73
    %v80 = vsub.f32 %v36, %v74
    %v81 = vsub.f32 %v37, %v75
    %v82 = vmul.f32 %v76, %v76
    %v83 = vmul.f32 %v77, %v77
    %v84 = vmul.f32 %v78, %v78
    %v85 = vmul.f32 %v79, %v79
    %v86 = vmul.f32 %v80, %v80
    %v87 = vmul.f32 %v81, %v81
    %v88 = vsel %vm50, %v82, 0.0
    %89 = vadd.xlane.f32.xlu0 %v88
    %v90 = vpop.xlane.xlu0 %89
    %v91 = vsel %vm50, %v83, 0.0
    %92 = vadd.xlane.f32.xlu0 %v91
    %v93 = vpop.xlane.xlu0 %92
    %v94 = vsel %vm50, %v84, 0.0
    %95 = vadd.xlane.f32.xlu0 %v94
    %v96 = vpop.xlane.xlu0 %95
    %v97 = vsel %vm50, %v85, 0.0
    %98 = vadd.xlane.f32.xlu0 %v97
    %v99 = vpop.xlane.xlu0 %98
    %v100 = vsel %vm50, %v86, 0.0
    %101 = vadd.xlane.f32.xlu0 %v100
    %v102 = vpop.xlane.xlu0 %101
    %v103 = vsel %vm50, %v87, 0.0
    %104 = vadd.xlane.f32.xlu0 %v103
    %v105 = vpop.xlane.xlu0 %104
    %v106 = vmul.f32 %v90, %v69
    %v107 = vmul.f32 %v93, %v69
    %v108 = vmul.f32 %v96, %v69
    %v109 = vmul.f32 %v99, %v69
    %v110 = vmul.f32 %v102, %v69
    %v111 = vmul.f32 %v105, %v69
    %v112 = vadd.f32 %v106, 1e-05
    %v113 = vadd.f32 %v107, 1e-05
    %v114 = vadd.f32 %v108, 1e-05
    %v115 = vadd.f32 %v109, 1e-05
    %v116 = vadd.f32 %v110, 1e-05
    %v117 = vadd.f32 %v111, 1e-05
    %v118 = vrsqrt.pop %v112
    %v119 = vrsqrt.pop %v113
    %v120 = vrsqrt.pop %v114
    %v121 = vrsqrt.pop %v115
    %v122 = vrsqrt.pop %v116
    %v123 = vrsqrt.pop %v117
    %v124 = vmul.f32 %v76, %v118
    %v125 = vmul.f32 %v77, %v119
    %v126 = vmul.f32 %v78, %v120
    %v127 = vmul.f32 %v79, %v121
    %v128 = vmul.f32 %v80, %v122
    %v129 = vmul.f32 %v81, %v123
    %v130 = vmul.f32 %v124, %v38
    %v131 = vmul.f32 %v125, %v39
    %v132 = vmul.f32 %v126, %v40
    %v133 = vmul.f32 %v127, %v41
    %v134 = vmul.f32 %v128, %v42
    %v135 = vmul.f32 %v129, %v43
    %v136 = vadd.f32 %v130, %v44
    %v137 = vadd.f32 %v131, %v45
    %v138 = vadd.f32 %v132, %v46
    %v139 = vadd.f32 %v133, %v47
    %v140 = vadd.f32 %v134, %v48
    %v141 = vadd.f32 %v135, %v49
    %v142 = vpack.c.bf16 %v137, %v136
    %v143 = vpack.c.bf16 %v139, %v138
    %v144 = vpack.c.bf16 %v141, %v140
    %v145 = vld [vmem:[%s2] sm:$0xf]
    %v146 = vld [vmem:[%s2 + $0x4] sm:$0xf]
    %v147 = vld [vmem:[%s2 + $0x8] sm:$0xf]
    %v148 = vld [vmem:[%s2 + $0xc] sm:$0xf]
    %v149 = vld [vmem:[#allocation2 + $0x70] sm:$0x1]
    %v150 = vlaneseq
    %v151 = vshrl.u32 %v150, 7
    %v152 = vsub.s32 0, %v151
    %v153 = vrot.slane %v149, %v152
    %v158 = vunpack.c.l.b16 %v145
    %v159 = vunpack.c.l.b16 %v146
    %v160 = vunpack.c.l.b16 %v147
    %v161 = vunpack.c.l.b16 %v148
    %v162 = vpack.c.b16 %v159, %v158
    %v163 = vpack.c.b16 %v161, %v160
    %v167 = vsel %vm50, %v142, 0
    %v170 = vsel %vm50, %v143, 0
    %v173 = vsel %vm50, %v144, 0
    %175 = vmatprep.subr.bf16.mxu0 0
    %176 = vmatpush1.bf16.msra.mxu0 %v162
    %177 = vmatprep.subr.bf16.mxu0 0
    %178 = vmatpush1.bf16.msra.mxu0 %v163
    %179 = vmatprep.subr.bf16.mxu0 0
    %180 = vmatpush1.bf16.msra.mxu0 0
    %181 = vmatprep.subr.bf16.mxu0 0
    %182 = vmatpush1.bf16.msra.mxu0 0
    %183 = vmatprep.subr.bf16.mxu0 0
    %184 = vmatpush1.bf16.msra.mxu0 0
    %185 = vmatprep.subr.bf16.mxu0 0
    %186 = vmatpush1.bf16.msra.mxu0 0
    %187 = vmatprep.subr.bf16.mxu0 0
    %188 = vmatpush1.bf16.msra.mxu0 0
    %189 = vmatprep.subr.bf16.mxu0 0
    %190 = vmatpush1.bf16.msra.mxu0 0
    %191 = vmatprep.subr.bf16.mxu0 0
    %192 = vmatpush1.bf16.msra.mxu0 0
    %193 = vmatprep.subr.bf16.mxu0 0
    %194 = vmatpush1.bf16.msra.mxu0 0
    %195 = vmatprep.subr.bf16.mxu0 0
    %196 = vmatpush1.bf16.msra.mxu0 0
    %197 = vmatprep.subr.bf16.mxu0 0
    %198 = vmatpush1.bf16.msra.mxu0 0
    %199 = vmatprep.subr.bf16.mxu0 0
    %200 = vmatpush1.bf16.msra.mxu0 0
    %201 = vmatprep.subr.bf16.mxu0 0
    %202 = vmatpush1.bf16.msra.mxu0 0
    %203 = vmatprep.subr.bf16.mxu0 0
    %204 = vmatpush1.bf16.msra.mxu0 0
    %205 = vmatprep.subr.bf16.mxu0 0
    %206 = vmatpush1.bf16.msra.mxu0 0
    %207 = vmatprep.mubr.bf16.mxu0 0
    %208 = vmatmul.mubr.bf16.gmra.mrb[0].mxu0 %v167
    %v209 = vpop.f32.mrb[0].mxu0
    %v210 = vadd.f32 %v153, %v209
    %v211 = vpop.f32.mrb[0].mxu0
    %v212 = vpop.f32.mrb[0].mxu0
    %v213 = vadd.f32 %v153, %v212
    %v214 = vpop.f32.mrb[0].mxu0
    %215 = vmatprep.mubr.bf16.mxu0 0
    %216 = vmatmul.mubr.bf16.gmra.mrb[0].mxu0 %v170
    %v217 = vpop.f32.mrb[0].mxu0
    %v218 = vadd.f32 %v153, %v217
    %v219 = vpop.f32.mrb[0].mxu0
    %v220 = vpop.f32.mrb[0].mxu0
    %v221 = vadd.f32 %v153, %v220
    %v222 = vpop.f32.mrb[0].mxu0
    %223 = vmatprep.mubr.bf16.mxu0 0
    %224 = vmatmul.mubr.bf16.gmra.mrb[0].mxu0 %v173
    %v225 = vpop.f32.mrb[0].mxu0
    %v226 = vadd.f32 %v153, %v225
    %v227 = vpop.f32.mrb[0].mxu0
    %v228 = vpop.f32.mrb[0].mxu0
    %v229 = vadd.f32 %v153, %v228
    %v230 = vpop.f32.mrb[0].mxu0
    %231 = vdwg.mxu0
    %v232 = vld [vmem:[#allocation2 + $0x60] sm:$0xff]
    %v233 = vld [vmem:[#allocation2 + $0x68] sm:$0xff]
    %v234 = vpack.c.bf16 %v213, %v210
    %239 = vrot.lane.b32.xlu0 %v218, 96
    %v240 = vpop.permute.xlu0 %239
    %241 = vrot.lane.b32.xlu0 %v221, 96
    %v242 = vpop.permute.xlu0 %241
    %243 = vrot.lane.b32.xlu0 %v226, 96
    %v244 = vpop.permute.xlu0 %243
    %245 = vrot.lane.b32.xlu0 %v229, 96
    %v246 = vpop.permute.xlu0 %245
    %251 = vxpose.xlu0.b32.start [1/16] %v240, 128
    %252 = vxpose.xlu0.b32.cont [2/16] %v242, 128
    %253 = vxpose.xlu0.b32.cont [3/16] %v244, 128
    %254 = vxpose.xlu0.b32.cont [4/16] %v246, 128
    %255 = vxpose.xlu0.b32.cont [5/16] 0.0, 128
    %256 = vxpose.xlu0.b32.cont [6/16] 0.0, 128
    %257 = vxpose.xlu0.b32.cont [7/16] 0.0, 128
    %258 = vxpose.xlu0.b32.cont [8/16] 0.0, 128
    %259 = vxpose.xlu0.b32.cont [9/16] 0.0, 128
    %260 = vxpose.xlu0.b32.cont [10/16] 0.0, 128
    %261 = vxpose.xlu0.b32.cont [11/16] 0.0, 128
    %262 = vxpose.xlu0.b32.cont [12/16] 0.0, 128
    %263 = vxpose.xlu0.b32.cont [13/16] 0.0, 128
    %264 = vxpose.xlu0.b32.cont [14/16] 0.0, 128
    %265 = vxpose.xlu0.b32.cont [15/16] 0.0, 128
    %266 = vxpose.xlu0.b32.end [16/16] 0.0, 128
    %v267 = vpop.trf.xlu0
    %v268 = vpop.trf.xlu0
    %v269 = vpop.trf.xlu0
    %v270 = vpop.trf.xlu0
    %v271 = vpop.trf.xlu0
    %v272 = vpop.trf.xlu0
    %v273 = vpop.trf.xlu0
    %v274 = vpop.trf.xlu0
    %v275 = vpop.trf.xlu0
    %v276 = vpop.trf.xlu0
    %v277 = vpop.trf.xlu0
    %v278 = vpop.trf.xlu0
    %v279 = vpop.trf.xlu0
    %v280 = vpop.trf.xlu0
    %v281 = vpop.trf.xlu0
    %v282 = vpop.trf.xlu0
    %v283 = vpack.c.bf16 %v221, %v218
    %v284 = vpack.c.bf16 %v229, %v226
    %v285 = vpack.c.bf16 %v267, %v267
    %vm286 = vcmask 64512
    %v288 = vsel %vm286, %v234, 0
    %vm290 = vcmask 1043456
    %v292 = vsel %vm290, %v285, 0
    %294 = vmatprep.subr.bf16.mxu0 0
    %295 = vmatpush1.bf16.msra.mxu0 %v292
    %296 = vmatprep.subr.bf16.mxu0 0
    %297 = vmatpush1.bf16.msra.mxu0 0
    %298 = vmatprep.subr.bf16.mxu0 0
    %299 = vmatpush1.bf16.msra.mxu0 0
    %300 = vmatprep.subr.bf16.mxu0 0
    %301 = vmatpush1.bf16.msra.mxu0 0
    %302 = vmatprep.subr.bf16.mxu0 0
    %303 = vmatpush1.bf16.msra.mxu0 0
    %304 = vmatprep.subr.bf16.mxu0 0
    %305 = vmatpush1.bf16.msra.mxu0 0
    %306 = vmatprep.subr.bf16.mxu0 0
    %307 = vmatpush1.bf16.msra.mxu0 0
    %308 = vmatprep.subr.bf16.mxu0 0
    %309 = vmatpush1.bf16.msra.mxu0 0
    %310 = vmatprep.subr.bf16.mxu0 0
    %311 = vmatpush1.bf16.msra.mxu0 0
    %312 = vmatprep.subr.bf16.mxu0 0
    %313 = vmatpush1.bf16.msra.mxu0 0
    %314 = vmatprep.subr.bf16.mxu0 0
    %315 = vmatpush1.bf16.msra.mxu0 0
    %316 = vmatprep.subr.bf16.mxu0 0
    %317 = vmatpush1.bf16.msra.mxu0 0
    %318 = vmatprep.subr.bf16.mxu0 0
    %319 = vmatpush1.bf16.msra.mxu0 0
    %320 = vmatprep.subr.bf16.mxu0 0
    %321 = vmatpush1.bf16.msra.mxu0 0
    %322 = vmatprep.subr.bf16.mxu0 0
    %323 = vmatpush1.bf16.msra.mxu0 0
    %324 = vmatprep.subr.bf16.mxu0 0
    %325 = vmatpush1.bf16.msra.mxu0 0
    %326 = vmatprep.mubr.bf16.mxu0 0
    %327 = vmatmul.mubr.bf16.gmra.mrb[0].mxu0 %v288
    %v328 = vpop.f32.mrb[0].mxu0
    %v329 = vadd.f32 %v232, %v328
    %v330 = vpop.f32.mrb[0].mxu0
    %v331 = vpop.f32.mrb[0].mxu0
    %v332 = vadd.f32 %v233, %v331
    %v333 = vpop.f32.mrb[0].mxu0
    %334 = vdwg.mxu0
    %v335 = vsel %vm50, %v329, -inf
    %336 = vmax.xlane.f32.xlu0 %v335
    %v337 = vpop.xlane.xlu0 %336
    %v338 = vsel %vm50, %v332, -inf
    %339 = vmax.xlane.f32.xlu0 %v338
    %v340 = vpop.xlane.xlu0 %339
    %v341 = vsub.f32 %v329, %v337
    %v342 = vsub.f32 %v332, %v340
    %v343 = vmul.f32 %v341, 1.442695
    %v344 = vpow.pop %v343
    %v345 = vmul.f32 %v342, 1.442695
    %v346 = vpow.pop %v345
    %v347 = vsel %vm50, %v344, 0.0
    %348 = vadd.xlane.f32.xlu0 %v347
    %v349 = vpop.xlane.xlu0 %348
    %v350 = vsel %vm50, %v346, 0.0
    %351 = vadd.xlane.f32.xlu0 %v350
    %v352 = vpop.xlane.xlu0 %351
    %v353 = vrcp.pop %v349
    %v354 = vrcp.pop %v352
    %v355 = vmul.f32 %v349, %v353
    %v356 = vmul.f32 %v352, %v354
    %v357 = vsub.f32 2.0, %v355
    %v358 = vsub.f32 2.0, %v356
    %v359 = vmul.f32 %v353, %v357
    %v360 = vmul.f32 %v354, %v358
    %v361 = vmul.f32 %v344, %v359
    %v362 = vmul.f32 %v346, %v360
    %v363 = vadd.f32 %v361, 0.0
    %v364 = vadd.f32 %v362, 0.0
    %v365 = vpack.c.bf16 %v362, %v361
    %368 = vrot.lane.b32.xlu0 %v283, 64
    %v369 = vpop.permute.xlu0 %368
    %370 = vrot.lane.b32.xlu0 %v284, 64
    %v371 = vpop.permute.xlu0 %370
    %v375 = vsel %vm50, %v365, 0
    %377 = vmatprep.subr.bf16.mxu0 0
    %378 = vmatpush1.bf16.msra.mxu0 %v369
    %379 = vmatprep.subr.bf16.mxu0 0
    %380 = vmatpush1.bf16.msra.mxu0 %v371
    %381 = vmatprep.subr.bf16.mxu0 0
    %382 = vmatpush1.bf16.msra.mxu0 0
    %383 = vmatprep.subr.bf16.mxu0 0
    %384 = vmatpush1.bf16.msra.mxu0 0
    %385 = vmatprep.subr.bf16.mxu0 0
    %386 = vmatpush1.bf16.msra.mxu0 0
    %387 = vmatprep.subr.bf16.mxu0 0
    %388 = vmatpush1.bf16.msra.mxu0 0
    %389 = vmatprep.subr.bf16.mxu0 0
    %390 = vmatpush1.bf16.msra.mxu0 0
    %391 = vmatprep.subr.bf16.mxu0 0
    %392 = vmatpush1.bf16.msra.mxu0 0
    %393 = vmatprep.subr.bf16.mxu0 0
    %394 = vmatpush1.bf16.msra.mxu0 0
    %395 = vmatprep.subr.bf16.mxu0 0
    %396 = vmatpush1.bf16.msra.mxu0 0
    %397 = vmatprep.subr.bf16.mxu0 0
    %398 = vmatpush1.bf16.msra.mxu0 0
    %399 = vmatprep.subr.bf16.mxu0 0
    %400 = vmatpush1.bf16.msra.mxu0 0
    %401 = vmatprep.subr.bf16.mxu0 0
    %402 = vmatpush1.bf16.msra.mxu0 0
    %403 = vmatprep.subr.bf16.mxu0 0
    %404 = vmatpush1.bf16.msra.mxu0 0
    %405 = vmatprep.subr.bf16.mxu0 0
    %406 = vmatpush1.bf16.msra.mxu0 0
    %407 = vmatprep.subr.bf16.mxu0 0
    %408 = vmatpush1.bf16.msra.mxu0 0
    %409 = vmatprep.mubr.bf16.mxu0 0
    %410 = vmatmul.mubr.bf16.gmra.mrb[0].mxu0 %v375
    %v411 = vpop.f32.mrb[0].mxu0
    %v412 = vadd.f32 0.0, %v411
    %v413 = vpop.f32.mrb[0].mxu0
    %v414 = vpop.f32.mrb[0].mxu0
    %v415 = vadd.f32 0.0, %v414
    %v416 = vpop.f32.mrb[0].mxu0
    %417 = vdwg.mxu0
    %v418 = vpack.c.bf16 %v268, %v268
    %420 = vrot.lane.b32.xlu0 %v234, 120
    %v421 = vpop.permute.xlu0 %420
    %v423 = vsel %vm286, %v421, 0
    %v426 = vsel %vm290, %v418, 0
    %428 = vmatprep.subr.bf16.mxu0 0
    %429 = vmatpush1.bf16.msra.mxu0 %v426
    %430 = vmatprep.subr.bf16.mxu0 0
    %431 = vmatpush1.bf16.msra.mxu0 0
    %432 = vmatprep.subr.bf16.mxu0 0
    %433 = vmatpush1.bf16.msra.mxu0 0
    %434 = vmatprep.subr.bf16.mxu0 0
    %435 = vmatpush1.bf16.msra.mxu0 0
    %436 = vmatprep.subr.bf16.mxu0 0
    %437 = vmatpush1.bf16.msra.mxu0 0
    %438 = vmatprep.subr.bf16.mxu0 0
    %439 = vmatpush1.bf16.msra.mxu0 0
    %440 = vmatprep.subr.bf16.mxu0 0
    %441 = vmatpush1.bf16.msra.mxu0 0
    %442 = vmatprep.subr.bf16.mxu0 0
    %443 = vmatpush1.bf16.msra.mxu0 0
    %444 = vmatprep.subr.bf16.mxu0 0
    %445 = vmatpush1.bf16.msra.mxu0 0
    %446 = vmatprep.subr.bf16.mxu0 0
    %447 = vmatpush1.bf16.msra.mxu0 0
    %448 = vmatprep.subr.bf16.mxu0 0
    %449 = vmatpush1.bf16.msra.mxu0 0
    %450 = vmatprep.subr.bf16.mxu0 0
    %451 = vmatpush1.bf16.msra.mxu0 0
    %452 = vmatprep.subr.bf16.mxu0 0
    %453 = vmatpush1.bf16.msra.mxu0 0
    %454 = vmatprep.subr.bf16.mxu0 0
    %455 = vmatpush1.bf16.msra.mxu0 0
    %456 = vmatprep.subr.bf16.mxu0 0
    %457 = vmatpush1.bf16.msra.mxu0 0
    %458 = vmatprep.subr.bf16.mxu0 0
    %459 = vmatpush1.bf16.msra.mxu0 0
    %460 = vmatprep.mubr.bf16.mxu0 0
    %461 = vmatmul.mubr.bf16.gmra.mrb[0].mxu0 %v423
    %v462 = vpop.f32.mrb[0].mxu0
    %v463 = vadd.f32 %v232, %v462
    %v464 = vpop.f32.mrb[0].mxu0
    %v465 = vpop.f32.mrb[0].mxu0
    %v466 = vadd.f32 %v233, %v465
    %v467 = vpop.f32.mrb[0].mxu0
    %468 = vdwg.mxu0
    %v469 = vsel %vm50, %v463, -inf
    %470 = vmax.xlane.f32.xlu0 %v469
    %v471 = vpop.xlane.xlu0 %470
    %v472 = vsel %vm50, %v466, -inf
    %473 = vmax.xlane.f32.xlu0 %v472
    %v474 = vpop.xlane.xlu0 %473
    %v475 = vsub.f32 %v463, %v471
    %v476 = vsub.f32 %v466, %v474
    %v477 = vmul.f32 %v475, 1.442695
    %v478 = vpow.pop %v477
    %v479 = vmul.f32 %v476, 1.442695
    %v480 = vpow.pop %v479
    %v481 = vsel %vm50, %v478, 0.0
    %482 = vadd.xlane.f32.xlu0 %v481
    %v483 = vpop.xlane.xlu0 %482
    %v484 = vsel %vm50, %v480, 0.0
    %485 = vadd.xlane.f32.xlu0 %v484
    %v486 = vpop.xlane.xlu0 %485
    %v487 = vrcp.pop %v483
    %v488 = vrcp.pop %v486
    %v489 = vmul.f32 %v483, %v487
    %v490 = vmul.f32 %v486, %v488
    %v491 = vsub.f32 2.0, %v489
    %v492 = vsub.f32 2.0, %v490
    %v493 = vmul.f32 %v487, %v491
    %v494 = vmul.f32 %v488, %v492
    %v495 = vmul.f32 %v478, %v493
    %v496 = vmul.f32 %v480, %v494
    %v497 = vadd.f32 %v363, %v495
    %v498 = vadd.f32 %v364, %v496
    %v499 = vpack.c.bf16 %v496, %v495
    %500 = vrot.lane.b32.xlu0 %v283, 56
    %v501 = vpop.permute.xlu0 %500
    %502 = vrot.lane.b32.xlu0 %v284, 56
    %v503 = vpop.permute.xlu0 %502
    %v507 = vsel %vm50, %v499, 0
    %509 = vmatprep.subr.bf16.mxu0 0
    %510 = vmatpush1.bf16.msra.mxu0 %v501
    %511 = vmatprep.subr.bf16.mxu0 0
    %512 = vmatpush1.bf16.msra.mxu0 %v503
    %513 = vmatprep.subr.bf16.mxu0 0
    %514 = vmatpush1.bf16.msra.mxu0 0
    %515 = vmatprep.subr.bf16.mxu0 0
    %516 = vmatpush1.bf16.msra.mxu0 0
    %517 = vmatprep.subr.bf16.mxu0 0
    %518 = vmatpush1.bf16.msra.mxu0 0
    %519 = vmatprep.subr.bf16.mxu0 0
    %520 = vmatpush1.bf16.msra.mxu0 0
    %521 = vmatprep.subr.bf16.mxu0 0
    %522 = vmatpush1.bf16.msra.mxu0 0
    %523 = vmatprep.subr.bf16.mxu0 0
    %524 = vmatpush1.bf16.msra.mxu0 0
    %525 = vmatprep.subr.bf16.mxu0 0
    %526 = vmatpush1.bf16.msra.mxu0 0
    %527 = vmatprep.subr.bf16.mxu0 0
    %528 = vmatpush1.bf16.msra.mxu0 0
    %529 = vmatprep.subr.bf16.mxu0 0
    %530 = vmatpush1.bf16.msra.mxu0 0
    %531 = vmatprep.subr.bf16.mxu0 0
    %532 = vmatpush1.bf16.msra.mxu0 0
    %533 = vmatprep.subr.bf16.mxu0 0
    %534 = vmatpush1.bf16.msra.mxu0 0
    %535 = vmatprep.subr.bf16.mxu0 0
    %536 = vmatpush1.bf16.msra.mxu0 0
    %537 = vmatprep.subr.bf16.mxu0 0
    %538 = vmatpush1.bf16.msra.mxu0 0
    %539 = vmatprep.subr.bf16.mxu0 0
    %540 = vmatpush1.bf16.msra.mxu0 0
    %541 = vmatprep.mubr.bf16.mxu0 0
    %542 = vmatmul.mubr.bf16.gmra.mrb[0].mxu0 %v507
    %v543 = vpop.f32.mrb[0].mxu0
    %v544 = vadd.f32 0.0, %v543
    %v545 = vpop.f32.mrb[0].mxu0
    %v546 = vpop.f32.mrb[0].mxu0
    %v547 = vadd.f32 0.0, %v546
    %v548 = vpop.f32.mrb[0].mxu0
    %549 = vdwg.mxu0
    %v550 = vpack.c.bf16 %v269, %v269
    %551 = vrot.lane.b32.xlu0 %v234, 112
    %v552 = vpop.permute.xlu0 %551
    %v554 = vsel %vm286, %v552, 0
    %v557 = vsel %vm290, %v550, 0
    %559 = vmatprep.subr.bf16.mxu0 0
    %560 = vmatpush1.bf16.msra.mxu0 %v557
    %561 = vmatprep.subr.bf16.mxu0 0
    %562 = vmatpush1.bf16.msra.mxu0 0
    %563 = vmatprep.subr.bf16.mxu0 0
    %564 = vmatpush1.bf16.msra.mxu0 0
    %565 = vmatprep.subr.bf16.mxu0 0
    %566 = vmatpush1.bf16.msra.mxu0 0
    %567 = vmatprep.subr.bf16.mxu0 0
    %568 = vmatpush1.bf16.msra.mxu0 0
    %569 = vmatprep.subr.bf16.mxu0 0
    %570 = vmatpush1.bf16.msra.mxu0 0
    %571 = vmatprep.subr.bf16.mxu0 0
    %572 = vmatpush1.bf16.msra.mxu0 0
    %573 = vmatprep.subr.bf16.mxu0 0
    %574 = vmatpush1.bf16.msra.mxu0 0
    %575 = vmatprep.subr.bf16.mxu0 0
    %576 = vmatpush1.bf16.msra.mxu0 0
    %577 = vmatprep.subr.bf16.mxu0 0
    %578 = vmatpush1.bf16.msra.mxu0 0
    %579 = vmatprep.subr.bf16.mxu0 0
    %580 = vmatpush1.bf16.msra.mxu0 0
    %581 = vmatprep.subr.bf16.mxu0 0
    %582 = vmatpush1.bf16.msra.mxu0 0
    %583 = vmatprep.subr.bf16.mxu0 0
    %584 = vmatpush1.bf16.msra.mxu0 0
    %585 = vmatprep.subr.bf16.mxu0 0
    %586 = vmatpush1.bf16.msra.mxu0 0
    %587 = vmatprep.subr.bf16.mxu0 0
    %588 = vmatpush1.bf16.msra.mxu0 0
    %589 = vmatprep.subr.bf16.mxu0 0
    %590 = vmatpush1.bf16.msra.mxu0 0
    %591 = vmatprep.mubr.bf16.mxu0 0
    %592 = vmatmul.mubr.bf16.gmra.mrb[0].mxu0 %v554
    %v593 = vpop.f32.mrb[0].mxu0
    %v594 = vadd.f32 %v232, %v593
    %v595 = vpop.f32.mrb[0].mxu0
    %v596 = vpop.f32.mrb[0].mxu0
    %v597 = vadd.f32 %v233, %v596
    %v598 = vpop.f32.mrb[0].mxu0
    %599 = vdwg.mxu0
    %v600 = vsel %vm50, %v594, -inf
    %601 = vmax.xlane.f32.xlu0 %v600
    %v602 = vpop.xlane.xlu0 %601
    %v603 = vsel %vm50, %v597, -inf
    %604 = vmax.xlane.f32.xlu0 %v603
    %v605 = vpop.xlane.xlu0 %604
    %v606 = vsub.f32 %v594, %v602
    %v607 = vsub.f32 %v597, %v605
    %v608 = vmul.f32 %v606, 1.442695
    %v609 = vpow.pop %v608
    %v610 = vmul.f32 %v607, 1.442695
    %v611 = vpow.pop %v610
    %v612 = vsel %vm50, %v609, 0.0
    %613 = vadd.xlane.f32.xlu0 %v612
    %v614 = vpop.xlane.xlu0 %613
    %v615 = vsel %vm50, %v611, 0.0
    %616 = vadd.xlane.f32.xlu0 %v615
    %v617 = vpop.xlane.xlu0 %616
    %v618 = vrcp.pop %v614
    %v619 = vrcp.pop %v617
    %v620 = vmul.f32 %v614, %v618
    %v621 = vmul.f32 %v617, %v619
    %v622 = vsub.f32 2.0, %v620
    %v623 = vsub.f32 2.0, %v621
    %v624 = vmul.f32 %v618, %v622
    %v625 = vmul.f32 %v619, %v623
    %v626 = vmul.f32 %v609, %v624
    %v627 = vmul.f32 %v611, %v625
    %v628 = vadd.f32 %v497, %v626
    %v629 = vadd.f32 %v498, %v627
    %v630 = vpack.c.bf16 %v627, %v626
    %631 = vrot.lane.b32.xlu0 %v283, 48
    %v632 = vpop.permute.xlu0 %631
    %633 = vrot.lane.b32.xlu0 %v284, 48
    %v634 = vpop.permute.xlu0 %633
    %v638 = vsel %vm50, %v630, 0
    %640 = vmatprep.subr.bf16.mxu0 0
    %641 = vmatpush1.bf16.msra.mxu0 %v632
    %642 = vmatprep.subr.bf16.mxu0 0
    %643 = vmatpush1.bf16.msra.mxu0 %v634
    %644 = vmatprep.subr.bf16.mxu0 0
    %645 = vmatpush1.bf16.msra.mxu0 0
    %646 = vmatprep.subr.bf16.mxu0 0
    %647 = vmatpush1.bf16.msra.mxu0 0
    %648 = vmatprep.subr.bf16.mxu0 0
    %649 = vmatpush1.bf16.msra.mxu0 0
    %650 = vmatprep.subr.bf16.mxu0 0
    %651 = vmatpush1.bf16.msra.mxu0 0
    %652 = vmatprep.subr.bf16.mxu0 0
    %653 = vmatpush1.bf16.msra.mxu0 0
    %654 = vmatprep.subr.bf16.mxu0 0
    %655 = vmatpush1.bf16.msra.mxu0 0
    %656 = vmatprep.subr.bf16.mxu0 0
    %657 = vmatpush1.bf16.msra.mxu0 0
    %658 = vmatprep.subr.bf16.mxu0 0
    %659 = vmatpush1.bf16.msra.mxu0 0
    %660 = vmatprep.subr.bf16.mxu0 0
    %661 = vmatpush1.bf16.msra.mxu0 0
    %662 = vmatprep.subr.bf16.mxu0 0
    %663 = vmatpush1.bf16.msra.mxu0 0
    %664 = vmatprep.subr.bf16.mxu0 0
    %665 = vmatpush1.bf16.msra.mxu0 0
    %666 = vmatprep.subr.bf16.mxu0 0
    %667 = vmatpush1.bf16.msra.mxu0 0
    %668 = vmatprep.subr.bf16.mxu0 0
    %669 = vmatpush1.bf16.msra.mxu0 0
    %670 = vmatprep.subr.bf16.mxu0 0
    %671 = vmatpush1.bf16.msra.mxu0 0
    %672 = vmatprep.mubr.bf16.mxu0 0
    %673 = vmatmul.mubr.bf16.gmra.mrb[0].mxu0 %v638
    %v674 = vpop.f32.mrb[0].mxu0
    %v675 = vadd.f32 0.0, %v674
    %v676 = vpop.f32.mrb[0].mxu0
    %v677 = vpop.f32.mrb[0].mxu0
    %v678 = vadd.f32 0.0, %v677
    %v679 = vpop.f32.mrb[0].mxu0
    %680 = vdwg.mxu0
    %v681 = vpack.c.bf16 %v270, %v270
    %682 = vrot.lane.b32.xlu0 %v234, 104
    %v683 = vpop.permute.xlu0 %682
    %v685 = vsel %vm286, %v683, 0
    %v688 = vsel %vm290, %v681, 0
    %690 = vmatprep.subr.bf16.mxu0 0
    %691 = vmatpush1.bf16.msra.mxu0 %v688
    %692 = vmatprep.subr.bf16.mxu0 0
    %693 = vmatpush1.bf16.msra.mxu0 0
    %694 = vmatprep.subr.bf16.mxu0 0
    %695 = vmatpush1.bf16.msra.mxu0 0
    %696 = vmatprep.subr.bf16.mxu0 0
    %697 = vmatpush1.bf16.msra.mxu0 0
    %698 = vmatprep.subr.bf16.mxu0 0
    %699 = vmatpush1.bf16.msra.mxu0 0
    %700 = vmatprep.subr.bf16.mxu0 0
    %701 = vmatpush1.bf16.msra.mxu0 0
    %702 = vmatprep.subr.bf16.mxu0 0
    %703 = vmatpush1.bf16.msra.mxu0 0
    %704 = vmatprep.subr.bf16.mxu0 0
    %705 = vmatpush1.bf16.msra.mxu0 0
    %706 = vmatprep.subr.bf16.mxu0 0
    %707 = vmatpush1.bf16.msra.mxu0 0
    %708 = vmatprep.subr.bf16.mxu0 0
    %709 = vmatpush1.bf16.msra.mxu0 0
    %710 = vmatprep.subr.bf16.mxu0 0
    %711 = vmatpush1.bf16.msra.mxu0 0
    %712 = vmatprep.subr.bf16.mxu0 0
    %713 = vmatpush1.bf16.msra.mxu0 0
    %714 = vmatprep.subr.bf16.mxu0 0
    %715 = vmatpush1.bf16.msra.mxu0 0
    %716 = vmatprep.subr.bf16.mxu0 0
    %717 = vmatpush1.bf16.msra.mxu0 0
    %718 = vmatprep.subr.bf16.mxu0 0
    %719 = vmatpush1.bf16.msra.mxu0 0
    %720 = vmatprep.subr.bf16.mxu0 0
    %721 = vmatpush1.bf16.msra.mxu0 0
    %722 = vmatprep.mubr.bf16.mxu0 0
    %723 = vmatmul.mubr.bf16.gmra.mrb[0].mxu0 %v685
    %v724 = vpop.f32.mrb[0].mxu0
    %v725 = vadd.f32 %v232, %v724
    %v726 = vpop.f32.mrb[0].mxu0
    %v727 = vpop.f32.mrb[0].mxu0
    %v728 = vadd.f32 %v233, %v727
    %v729 = vpop.f32.mrb[0].mxu0
    %730 = vdwg.mxu0
    %v731 = vsel %vm50, %v725, -inf
    %732 = vmax.xlane.f32.xlu0 %v731
    %v733 = vpop.xlane.xlu0 %732
    %v734 = vsel %vm50, %v728, -inf
    %735 = vmax.xlane.f32.xlu0 %v734
    %v736 = vpop.xlane.xlu0 %735
    %v737 = vsub.f32 %v725, %v733
    %v738 = vsub.f32 %v728, %v736
    %v739 = vmul.f32 %v737, 1.442695
    %v740 = vpow.pop %v739
    %v741 = vmul.f32 %v738, 1.442695
    %v742 = vpow.pop %v741
    %v743 = vsel %vm50, %v740, 0.0
    %744 = vadd.xlane.f32.xlu0 %v743
    %v745 = vpop.xlane.xlu0 %744
    %v746 = vsel %vm50, %v742, 0.0
    %747 = vadd.xlane.f32.xlu0 %v746
    %v748 = vpop.xlane.xlu0 %747
    %v749 = vrcp.pop %v745
    %v750 = vrcp.pop %v748
    %v751 = vmul.f32 %v745, %v749
    %v752 = vmul.f32 %v748, %v750
    %v753 = vsub.f32 2.0, %v751
    %v754 = vsub.f32 2.0, %v752
    %v755 = vmul.f32 %v749, %v753
    %v756 = vmul.f32 %v750, %v754
    %v757 = vmul.f32 %v740, %v755
    %v758 = vmul.f32 %v742, %v756
    %v759 = vadd.f32 %v628, %v757
    %v760 = vadd.f32 %v629, %v758
    %v761 = vpack.c.bf16 %v758, %v757
    %762 = vrot.lane.b32.xlu0 %v283, 40
    %v763 = vpop.permute.xlu0 %762
    %764 = vrot.lane.b32.xlu0 %v284, 40
    %v765 = vpop.permute.xlu0 %764
    %v769 = vsel %vm50, %v761, 0
    %771 = vmatprep.subr.bf16.mxu0 0
    %772 = vmatpush1.bf16.msra.mxu0 %v763
    %773 = vmatprep.subr.bf16.mxu0 0
    %774 = vmatpush1.bf16.msra.mxu0 %v765
    %775 = vmatprep.subr.bf16.mxu0 0
    %776 = vmatpush1.bf16.msra.mxu0 0
    %777 = vmatprep.subr.bf16.mxu0 0
    %778 = vmatpush1.bf16.msra.mxu0 0
    %779 = vmatprep.subr.bf16.mxu0 0
    %780 = vmatpush1.bf16.msra.mxu0 0
    %781 = vmatprep.subr.bf16.mxu0 0
    %782 = vmatpush1.bf16.msra.mxu0 0
    %783 = vmatprep.subr.bf16.mxu0 0
    %784 = vmatpush1.bf16.msra.mxu0 0
    %785 = vmatprep.subr.bf16.mxu0 0
    %786 = vmatpush1.bf16.msra.mxu0 0
    %787 = vmatprep.subr.bf16.mxu0 0
    %788 = vmatpush1.bf16.msra.mxu0 0
    %789 = vmatprep.subr.bf16.mxu0 0
    %790 = vmatpush1.bf16.msra.mxu0 0
    %791 = vmatprep.subr.bf16.mxu0 0
    %792 = vmatpush1.bf16.msra.mxu0 0
    %793 = vmatprep.subr.bf16.mxu0 0
    %794 = vmatpush1.bf16.msra.mxu0 0
    %795 = vmatprep.subr.bf16.mxu0 0
    %796 = vmatpush1.bf16.msra.mxu0 0
    %797 = vmatprep.subr.bf16.mxu0 0
    %798 = vmatpush1.bf16.msra.mxu0 0
    %799 = vmatprep.subr.bf16.mxu0 0
    %800 = vmatpush1.bf16.msra.mxu0 0
    %801 = vmatprep.subr.bf16.mxu0 0
    %802 = vmatpush1.bf16.msra.mxu0 0
    %803 = vmatprep.mubr.bf16.mxu0 0
    %804 = vmatmul.mubr.bf16.gmra.mrb[0].mxu0 %v769
    %v805 = vpop.f32.mrb[0].mxu0
    %v806 = vadd.f32 0.0, %v805
    %v807 = vpop.f32.mrb[0].mxu0
    %v808 = vpop.f32.mrb[0].mxu0
    %v809 = vadd.f32 0.0, %v808
    %v810 = vpop.f32.mrb[0].mxu0
    %811 = vdwg.mxu0
    %v812 = vmul.f32 %v759, 0.25
    %v813 = vmul.f32 %v760, 0.25
    %814 = vst.msk [vmem:[%s4] sm:$0xff] %vm50, %v812
    %815 = vst.msk [vmem:[%s4 + $0x8] sm:$0xff] %vm50, %v813
    %818 = vrot.lane.b32.xlu0 %v544, 8
    %v819 = vpop.permute.xlu0 %818
    %820 = vrot.lane.b32.xlu0 %v547, 8
    %v821 = vpop.permute.xlu0 %820
    %826 = vrot.lane.b32.xlu0 %v675, 16
    %v827 = vpop.permute.xlu0 %826
    %828 = vrot.lane.b32.xlu0 %v678, 16
    %v829 = vpop.permute.xlu0 %828
    %834 = vrot.lane.b32.xlu0 %v806, 24
    %v835 = vpop.permute.xlu0 %834
    %836 = vrot.lane.b32.xlu0 %v809, 24
    %v837 = vpop.permute.xlu0 %836
    %v840 = vsel %vm286, %v412, %v819
    %v841 = vsel %vm286, %v415, %v821
    %vm842 = vcmask 130048
    %v843 = vsel %vm842, %v840, %v827
    %v844 = vsel %vm842, %v841, %v829
    %vm845 = vcmask 195584
    %v846 = vsel %vm845, %v843, %v835
    %v847 = vsel %vm845, %v844, %v837
    %v848 = vld [vmem:[%s2 + $0x10] sm:$0xf]
    %v849 = vld [vmem:[%s2 + $0x14] sm:$0xf]
    %v850 = vld [vmem:[%s2 + $0x18] sm:$0xf]
    %v851 = vld [vmem:[%s2 + $0x1c] sm:$0xf]
    %v852 = vpack.c.bf16 %v847, %v846
    %v853 = vld [vmem:[#allocation2 + $0x71] sm:$0x1]
    %v854 = vlaneseq
    %v855 = vshrl.u32 %v854, 7
    %v856 = vsub.s32 0, %v855
    %v857 = vrot.slane %v853, %v856
    %v862 = vunpack.c.l.b16 %v848
    %v863 = vunpack.c.l.b16 %v849
    %v864 = vunpack.c.l.b16 %v850
    %v865 = vunpack.c.l.b16 %v851
    %v866 = vpack.c.b16 %v863, %v862
    %v867 = vpack.c.b16 %v865, %v864
    %v871 = vsel %vm50, %v852, 0
    %873 = vmatprep.subr.bf16.mxu0 0
    %874 = vmatpush1.bf16.msra.mxu0 %v866
    %875 = vmatprep.subr.bf16.mxu0 0
    %876 = vmatpush1.bf16.msra.mxu0 %v867
    %877 = vmatprep.subr.bf16.mxu0 0
    %878 = vmatpush1.bf16.msra.mxu0 0
    %879 = vmatprep.subr.bf16.mxu0 0
    %880 = vmatpush1.bf16.msra.mxu0 0
    %881 = vmatprep.subr.bf16.mxu0 0
    %882 = vmatpush1.bf16.msra.mxu0 0
    %883 = vmatprep.subr.bf16.mxu0 0
    %884 = vmatpush1.bf16.msra.mxu0 0
    %885 = vmatprep.subr.bf16.mxu0 0
    %886 = vmatpush1.bf16.msra.mxu0 0
    %887 = vmatprep.subr.bf16.mxu0 0
    %888 = vmatpush1.bf16.msra.mxu0 0
    %889 = vmatprep.subr.bf16.mxu0 0
    %890 = vmatpush1.bf16.msra.mxu0 0
    %891 = vmatprep.subr.bf16.mxu0 0
    %892 = vmatpush1.bf16.msra.mxu0 0
    %893 = vmatprep.subr.bf16.mxu0 0
    %894 = vmatpush1.bf16.msra.mxu0 0
    %895 = vmatprep.subr.bf16.mxu0 0
    %896 = vmatpush1.bf16.msra.mxu0 0
    %897 = vmatprep.subr.bf16.mxu0 0
    %898 = vmatpush1.bf16.msra.mxu0 0
    %899 = vmatprep.subr.bf16.mxu0 0
    %900 = vmatpush1.bf16.msra.mxu0 0
    %901 = vmatprep.subr.bf16.mxu0 0
    %902 = vmatpush1.bf16.msra.mxu0 0
    %903 = vmatprep.subr.bf16.mxu0 0
    %904 = vmatpush1.bf16.msra.mxu0 0
    %905 = vmatprep.mubr.bf16.mxu0 0
    %906 = vmatmul.mubr.bf16.gmra.mrb[0].mxu0 %v871
    %v907 = vpop.f32.mrb[0].mxu0
    %v908 = vadd.f32 %v857, %v907
    %v909 = vpop.f32.mrb[0].mxu0
    %v910 = vpop.f32.mrb[0].mxu0
    %v911 = vadd.f32 %v857, %v910
    %v912 = vpop.f32.mrb[0].mxu0
    %913 = vdwg.mxu0
    %v914 = vadd.f32 %v136, %v908
    %v915 = vadd.f32 %v137, %v911
    %v916 = vld [vmem:[#allocation2 + $0x74] sm:$0x1]
    %v917 = vld [vmem:[#allocation2 + $0x75] sm:$0x1]
    %v918 = vsel %vm50, %v914, 0.0
    %919 = vadd.xlane.f32.xlu0 %v918
    %v920 = vpop.xlane.xlu0 %919
    %v921 = vsel %vm50, %v915, 0.0
    %922 = vadd.xlane.f32.xlu0 %v921
    %v923 = vpop.xlane.xlu0 %922
    %v924 = vmul.f32 %v920, %v69
    %v925 = vmul.f32 %v923, %v69
    %v926 = vsub.f32 %v914, %v924
    %v927 = vsub.f32 %v915, %v925
    %v928 = vmul.f32 %v926, %v926
    %v929 = vmul.f32 %v927, %v927
    %v930 = vsel %vm50, %v928, 0.0
    %931 = vadd.xlane.f32.xlu0 %v930
    %v932 = vpop.xlane.xlu0 %931
    %v933 = vsel %vm50, %v929, 0.0
    %934 = vadd.xlane.f32.xlu0 %v933
    %v935 = vpop.xlane.xlu0 %934
    %v936 = vmul.f32 %v932, %v69
    %v937 = vmul.f32 %v935, %v69
    %v938 = vadd.f32 %v936, 1e-05
    %v939 = vadd.f32 %v937, 1e-05
    %v940 = vrsqrt.pop %v938
    %v941 = vrsqrt.pop %v939
    %v942 = vmul.f32 %v926, %v940
    %v943 = vmul.f32 %v927, %v941
    %v944 = vlaneseq
    %v945 = vshrl.u32 %v944, 7
    %v946 = vsub.s32 0, %v945
    %v947 = vrot.slane %v916, %v946
    %v948 = vmul.f32 %v942, %v947
    %v949 = vmul.f32 %v943, %v947
    %v950 = vlaneseq
    %v951 = vshrl.u32 %v950, 7
    %v952 = vsub.s32 0, %v951
    %v953 = vrot.slane %v917, %v952
    %v954 = vadd.f32 %v948, %v953
    %v955 = vadd.f32 %v949, %v953
    %v956 = vld [vmem:[%s2 + $0x20] sm:$0xf]
    %v957 = vld [vmem:[%s2 + $0x24] sm:$0xf]
    %v958 = vld [vmem:[%s2 + $0x28] sm:$0xf]
    %v959 = vld [vmem:[%s2 + $0x2c] sm:$0xf]
    %v960 = vld [vmem:[%s2 + $0x30] sm:$0xf]
    %v961 = vld [vmem:[%s2 + $0x34] sm:$0xf]
    %v962 = vld [vmem:[%s2 + $0x38] sm:$0xf]
    %v963 = vld [vmem:[%s2 + $0x3c] sm:$0xf]
    %v964 = vld [vmem:[%s2 + $0x40] sm:$0xf]
    %v965 = vld [vmem:[%s2 + $0x44] sm:$0xf]
    %v966 = vld [vmem:[%s2 + $0x48] sm:$0xf]
    %v967 = vld [vmem:[%s2 + $0x4c] sm:$0xf]
    %v968 = vpack.c.bf16 %v955, %v954
    %v969 = vld [vmem:[#allocation2 + $0x72] sm:$0x1]
    %v970 = vlaneseq
    %v971 = vshrl.u32 %v970, 7
    %v972 = vsub.s32 0, %v971
    %v973 = vrot.slane %v969, %v972
    %v978 = vunpack.c.l.b16 %v956
    %v979 = vunpack.c.l.b16 %v957
    %v980 = vunpack.c.l.b16 %v958
    %v981 = vunpack.c.l.b16 %v959
    %v982 = vpack.c.b16 %v979, %v978
    %v983 = vpack.c.b16 %v981, %v980
    %v987 = vsel %vm50, %v968, 0
    %989 = vmatprep.subr.bf16.mxu0 0
    %990 = vmatpush1.bf16.msra.mxu0 %v982
    %991 = vmatprep.subr.bf16.mxu0 0
    %992 = vmatpush1.bf16.msra.mxu0 %v983
    %993 = vmatprep.subr.bf16.mxu0 0
    %994 = vmatpush1.bf16.msra.mxu0 0
    %995 = vmatprep.subr.bf16.mxu0 0
    %996 = vmatpush1.bf16.msra.mxu0 0
    %997 = vmatprep.subr.bf16.mxu0 0
    %998 = vmatpush1.bf16.msra.mxu0 0
    %999 = vmatprep.subr.bf16.mxu0 0
    %1000 = vmatpush1.bf16.msra.mxu0 0
    %1001 = vmatprep.subr.bf16.mxu0 0
    %1002 = vmatpush1.bf16.msra.mxu0 0
    %1003 = vmatprep.subr.bf16.mxu0 0
    %1004 = vmatpush1.bf16.msra.mxu0 0
    %1005 = vmatprep.subr.bf16.mxu0 0
    %1006 = vmatpush1.bf16.msra.mxu0 0
    %1007 = vmatprep.subr.bf16.mxu0 0
    %1008 = vmatpush1.bf16.msra.mxu0 0
    %1009 = vmatprep.subr.bf16.mxu0 0
    %1010 = vmatpush1.bf16.msra.mxu0 0
    %1011 = vmatprep.subr.bf16.mxu0 0
    %1012 = vmatpush1.bf16.msra.mxu0 0
    %1013 = vmatprep.subr.bf16.mxu0 0
    %1014 = vmatpush1.bf16.msra.mxu0 0
    %1015 = vmatprep.subr.bf16.mxu0 0
    %1016 = vmatpush1.bf16.msra.mxu0 0
    %1017 = vmatprep.subr.bf16.mxu0 0
    %1018 = vmatpush1.bf16.msra.mxu0 0
    %1019 = vmatprep.subr.bf16.mxu0 0
    %1020 = vmatpush1.bf16.msra.mxu0 0
    %1021 = vmatprep.mubr.bf16.mxu0 0
    %1022 = vmatmul.mubr.bf16.gmra.mrb[0].mxu0 %v987
    %v1023 = vpop.f32.mrb[0].mxu0
    %v1024 = vadd.f32 %v973, %v1023
    %v1025 = vpop.f32.mrb[0].mxu0
    %v1026 = vpop.f32.mrb[0].mxu0
    %v1027 = vadd.f32 %v973, %v1026
    %v1028 = vpop.f32.mrb[0].mxu0
    %1029 = vdwg.mxu0
    %v1030 = vmax.f32 %v1024, 0.0
    %v1031 = vmax.f32 %v1027, 0.0
    %v1032 = vpack.c.bf16 %v1031, %v1030
    %v1033 = vld [vmem:[#allocation2 + $0x73] sm:$0x1]
    %v1034 = vlaneseq
    %v1035 = vshrl.u32 %v1034, 7
    %v1036 = vsub.s32 0, %v1035
    %v1037 = vrot.slane %v1033, %v1036
    %v1046 = vunpack.c.l.b16 %v960
    %v1047 = vunpack.c.l.b16 %v961
    %v1048 = vunpack.c.l.b16 %v962
    %v1049 = vunpack.c.l.b16 %v963
    %v1050 = vunpack.c.l.b16 %v964
    %v1051 = vunpack.c.l.b16 %v965
    %v1052 = vunpack.c.l.b16 %v966
    %v1053 = vunpack.c.l.b16 %v967
    %v1054 = vpack.c.b16 %v1047, %v1046
    %v1055 = vpack.c.b16 %v1049, %v1048
    %v1056 = vpack.c.b16 %v1051, %v1050
    %v1057 = vpack.c.b16 %v1053, %v1052
    %vm1062 = vcmask 523264
    %v1064 = vsel %vm1062, %v1032, 0
    %1066 = vmatprep.subr.bf16.mxu0 0
    %1067 = vmatpush1.bf16.msra.mxu0 %v1054
    %1068 = vmatprep.subr.bf16.mxu0 0
    %1069 = vmatpush1.bf16.msra.mxu0 %v1055
    %1070 = vmatprep.subr.bf16.mxu0 0
    %1071 = vmatpush1.bf16.msra.mxu0 %v1056
    %1072 = vmatprep.subr.bf16.mxu0 0
    %1073 = vmatpush1.bf16.msra.mxu0 %v1057
    %1074 = vmatprep.subr.bf16.mxu0 0
    %1075 = vmatpush1.bf16.msra.mxu0 0
    %1076 = vmatprep.subr.bf16.mxu0 0
    %1077 = vmatpush1.bf16.msra.mxu0 0
    %1078 = vmatprep.subr.bf16.mxu0 0
    %1079 = vmatpush1.bf16.msra.mxu0 0
    %1080 = vmatprep.subr.bf16.mxu0 0
    %1081 = vmatpush1.bf16.msra.mxu0 0
    %1082 = vmatprep.subr.bf16.mxu0 0
    %1083 = vmatpush1.bf16.msra.mxu0 0
    %1084 = vmatprep.subr.bf16.mxu0 0
    %1085 = vmatpush1.bf16.msra.mxu0 0
    %1086 = vmatprep.subr.bf16.mxu0 0
    %1087 = vmatpush1.bf16.msra.mxu0 0
    %1088 = vmatprep.subr.bf16.mxu0 0
    %1089 = vmatpush1.bf16.msra.mxu0 0
    %1090 = vmatprep.subr.bf16.mxu0 0
    %1091 = vmatpush1.bf16.msra.mxu0 0
    %1092 = vmatprep.subr.bf16.mxu0 0
    %1093 = vmatpush1.bf16.msra.mxu0 0
    %1094 = vmatprep.subr.bf16.mxu0 0
    %1095 = vmatpush1.bf16.msra.mxu0 0
    %1096 = vmatprep.subr.bf16.mxu0 0
    %1097 = vmatpush1.bf16.msra.mxu0 0
    %1098 = vmatprep.mubr.bf16.mxu0 0
    %1099 = vmatmul.mubr.bf16.gmra.mrb[0].mxu0 %v1064
    %v1100 = vpop.f32.mrb[0].mxu0
    %v1101 = vadd.f32 %v1037, %v1100
    %v1102 = vpop.f32.mrb[0].mxu0
    %v1103 = vpop.f32.mrb[0].mxu0
    %v1104 = vadd.f32 %v1037, %v1103
    %v1105 = vpop.f32.mrb[0].mxu0
    %1106 = vdwg.mxu0
    %v1107 = vadd.f32 %v954, %v1101
    %v1108 = vadd.f32 %v955, %v1104
    %v1109 = vld [vmem:[#allocation2 + $0x76] sm:$0x1]
    %v1110 = vld [vmem:[#allocation2 + $0x77] sm:$0x1]
    %v1111 = vsel %vm50, %v1107, 0.0
    %1112 = vadd.xlane.f32.xlu0 %v1111
    %v1113 = vpop.xlane.xlu0 %1112
    %v1114 = vsel %vm50, %v1108, 0.0
    %1115 = vadd.xlane.f32.xlu0 %v1114
    %v1116 = vpop.xlane.xlu0 %1115
    %v1117 = vmul.f32 %v1113, %v69
    %v1118 = vmul.f32 %v1116, %v69
    %v1119 = vsub.f32 %v1107, %v1117
    %v1120 = vsub.f32 %v1108, %v1118
    %v1121 = vmul.f32 %v1119, %v1119
    %v1122 = vmul.f32 %v1120, %v1120
    %v1123 = vsel %vm50, %v1121, 0.0
    %1124 = vadd.xlane.f32.xlu0 %v1123
    %v1125 = vpop.xlane.xlu0 %1124
    %v1126 = vsel %vm50, %v1122, 0.0
    %1127 = vadd.xlane.f32.xlu0 %v1126
    %v1128 = vpop.xlane.xlu0 %1127
    %v1129 = vmul.f32 %v1125, %v69
    %v1130 = vmul.f32 %v1128, %v69
    %v1131 = vadd.f32 %v1129, 1e-05
    %v1132 = vadd.f32 %v1130, 1e-05
    %v1133 = vrsqrt.pop %v1131
    %v1134 = vrsqrt.pop %v1132
    %v1135 = vmul.f32 %v1119, %v1133
    %v1136 = vmul.f32 %v1120, %v1134
    %v1137 = vlaneseq
    %v1138 = vshrl.u32 %v1137, 7
    %v1139 = vsub.s32 0, %v1138
    %v1140 = vrot.slane %v1109, %v1139
    %v1141 = vmul.f32 %v1135, %v1140
    %v1142 = vmul.f32 %v1136, %v1140
    %v1143 = vlaneseq
    %v1144 = vshrl.u32 %v1143, 7
    %v1145 = vsub.s32 0, %v1144
    %v1146 = vrot.slane %v1110, %v1145
    %v1147 = vadd.f32 %v1141, %v1146
    %v1148 = vadd.f32 %v1142, %v1146
    %1149 = vst.msk [vmem:[#allocation5] sm:$0xff] %vm50, %v1147
    %1150 = vst.msk [vmem:[#allocation5 + $0x8] sm:$0xff] %vm50, %v1148
    // Predicated region
    $region18: #{frame_layer.1} parent=1 // pred_check
      _
    $region19: #{frame_layer.1} parent=1 // pred_check_branch
      %1152 = sbr.rel (0) target = $region21
    $region20: #{frame_layer.1} parent=1 // pred_region
      %s1154 = ssub.s32 256, 256
      %1155 = vsyncadd [#allocation4], %s1154
      %s1156 = sshll.u32 [#allocation5], 4
      %s1157 = int_to_ptr.vmem [resolvable:$true] %s1156
      %1162 = dma.vmem_to_hbm [thread:$0]  %s1157, 256, %s3, [#allocation4], 128, 128, 8
    $region21: #{frame_layer.1} parent=1 // pred_fallthru
      _
    // Predicated region
    $region22: #{frame_layer.1} parent=1 // pred_check
      _
    $region23: #{frame_layer.1} parent=1 // pred_check_branch
      %1164 = sbr.rel (0) target = $region25
    $region24: #{frame_layer.1} parent=1 // pred_region
      _
    $region25: #{frame_layer.1} parent=1 // pred_fallthru
      _
    // Predicated region
    $region26: #{frame_layer.1} parent=1 // pred_check
      _
    $region27: #{frame_layer.1} parent=1 // pred_check_branch
      %1166 = sbr.rel (0) target = $region29
    $region28: #{frame_layer.1} parent=1 // pred_region
      %1167 = dma.done [#allocation4], 256
    $region29: #{frame_layer.1} parent=1 // pred_fallthru
      _
    // Predicated region
    $region30: #{frame_layer.1} parent=1 // pred_check
      _
    $region31: #{frame_layer.1} parent=1 // pred_check_branch
      %1169 = sbr.rel (0) target = $region33
    $region32: #{frame_layer.1} parent=1 // pred_region
      _
    $region33: #{frame_layer.1} parent=1 // pred_fallthru
      _
    %1170 = vsyncpa [#allocation3], 1
    %1171 = vsyncpa [#allocation4], 1

</llo_original>
